<compile_context>
chip_gen: v5e
topology: v5e:2x2
jax: 0.10.0
libtpu: 0.0.40
codegen_flags: <defaults>
</compile_context>

<pallas_src>
import functools

import jax
import jax.numpy as jnp
from jax.experimental import pallas as pl
from jax.experimental.pallas import tpu as pltpu

LRELU_SLOPE = 0.2
BN_EPS = 1e-5


def _leaky_relu(x):
    # Identical to LeakyReLU(0.2) for 0 < slope < 1; mul+max instead of mul+cmp+select.
    return jnp.maximum(x, LRELU_SLOPE * x)


def _stats_kernel(x_ref, w1_ref, b1_ref, stats_ref, *, hw, tile_hw, need_mask):
    """conv1(+bias) -> LeakyReLU -> per-tile [Gram(h1) | sum(h1)].

    BatchNorm statistics of h2 = w2 @ h1 are recovered outside the kernel:
        sum_h2   = w2_t @ sum_h1
        sumsq_h2 = diag(w2_t @ Gram @ w2_t.T)
    so neither the (ndf2 x tile) conv2 matmul nor the h2*h2 VPU pass runs in pass 1.
    """
    x = x_ref[0].astype(jnp.bfloat16)                                  # (c_in, tile_hw)
    h1 = jnp.dot(w1_ref[...], x, preferred_element_type=jnp.float32) + b1_ref[...]
    h1 = _leaky_relu(h1)                                               # (ndf, tile_hw) f32
    if need_mask:
        # Mask pixel columns beyond the ragged end of this batch row's H*W extent so
        # they do not pollute the batch statistics.
        col = (jax.lax.broadcasted_iota(jnp.int32, (1, tile_hw), 1)
               + pl.program_id(1) * tile_hw)
        h1 = jnp.where(col < hw, h1, 0.0)
    h1b = h1.astype(jnp.bfloat16)
    # Gram = h1 @ h1.T without materializing a transpose; contraction over tile_hw.
    gram = jax.lax.dot_general(h1b, h1b, (((1,), (1,)), ((), ())),
                               preferred_element_type=jnp.float32)     # (ndf, ndf)
    s = jnp.sum(h1, axis=1, keepdims=True)                             # (ndf, 1) f32 (XLU)
    stats_ref[...] = jnp.concatenate([gram, s], axis=1)[None, None]    # (1,1,ndf,ndf+1)


def _fwd_kernel(x_ref, w1_ref, b1_ref, w2s_ref, shift_ref, w3_ref, out_ref):
    """conv1(+bias) -> LeakyReLU -> conv2 (BN scale pre-folded) -> +BN shift
    -> LeakyReLU -> conv3.  Output tile is a lane-dense (1, tile_hw) bf16 slab."""
    x = x_ref[0].astype(jnp.bfloat16)                                  # (c_in, tile_hw)
    h1 = jnp.dot(w1_ref[...], x, preferred_element_type=jnp.float32) + b1_ref[...]
    h1 = _leaky_relu(h1).astype(jnp.bfloat16)                          # (ndf, tile_hw)
    h = jnp.dot(w2s_ref[...], h1, preferred_element_type=jnp.float32) + shift_ref[...]
    h = _leaky_relu(h).astype(jnp.bfloat16)                            # (ndf2, tile_hw)
    out = jnp.dot(w3_ref[...], h, preferred_element_type=jnp.float32)  # (1, tile_hw)
    out_ref[...] = out[None].astype(out_ref.dtype)


def _round_up(a, b):
    return (a + b - 1) // b * b


def pixel_discriminator_forward(x_nchw, params, *, tile_hw=8192, out_dtype=jnp.bfloat16):
    """Forward pass.  `tile_hw` (pixels per grid step) is the main tuning knob:
    keep <= 16384 on v7x (64 MiB VMEM), up to ~32768 on v5e/v6e with a raised
    vmem_limit_bytes."""
    w1, b1, w2 = params["w1"], params["b1"], params["w2"]
    gamma, beta, w3 = params["gamma"], params["beta"], params["w3"]

    n, c_in, hh, ww = x_nchw.shape
    hw = hh * ww
    m = n * hw
    ndf = w1.shape[1]
    ndf2 = w2.shape[1]

    # Native layout: NCHW -> (N, C, H*W) is a free reshape (no transpose/pad/cast copies).
    x3 = x_nchw.reshape(n, c_in, hw)

    # ---- tile selection ----
    max_tile = max(128, (tile_hw // 128) * 128)
    if n == 1:
        # Keep >= 2 grid steps so both v7x TensorCores get work on single-image batches.
        max_tile = min(max_tile, _round_up(-(-hw // 2), 128))
    if hw <= max_tile:
        tile, num_hw_tiles = hw, 1
    else:
        tile = max_tile
        num_hw_tiles = -(-hw // tile)
    hw_pad = num_hw_tiles * tile
    need_mask = (hw % tile) != 0  # ragged last tile -> mask it out of the statistics

    # bf16 matmul operands (native MXU rate); f32 bias/shift for the accumulator adds.
    w1_t = w1.T.astype(jnp.bfloat16)                  # (ndf, c_in)
    b1_c = b1.reshape(ndf, 1).astype(jnp.float32)     # (ndf, 1)  lane-broadcast add
    w2_t = w2.T.astype(jnp.float32)                   # (ndf2, ndf)  f32 for stats post-proc

    cparams = pltpu.CompilerParams(
        dimension_semantics=("parallel", "parallel"),  # per-tile partials => v7x dual-TC OK
        vmem_limit_bytes=32 * 1024 * 1024,             # ~10 MiB live at tile_hw=8192
    )

    # ---- Pass 1: per-tile [Gram(h1) | sum(h1)] partials (tiny output) ----
    stats = pl.pallas_call(
        functools.partial(_stats_kernel, hw=hw, tile_hw=tile, need_mask=need_mask),
        out_shape=jax.ShapeDtypeStruct((n, num_hw_tiles, ndf, ndf + 1), jnp.float32),
        grid=(n, num_hw_tiles),
        in_specs=[
            pl.BlockSpec((1, c_in, tile), lambda b, t: (b, 0, t)),
            pl.BlockSpec((ndf, c_in), lambda b, t: (0, 0)),
            pl.BlockSpec((ndf, 1), lambda b, t: (0, 0)),
        ],
        out_specs=pl.BlockSpec((1, 1, ndf, ndf + 1), lambda b, t: (b, t, 0, 0)),
        compiler_params=cparams,
    )(x3, w1_t, b1_c)

    stats = jnp.sum(stats, axis=(0, 1))               # (ndf, ndf+1) f32
    gram = stats[:, :ndf]                             # (ndf, ndf)
    sum_h1 = stats[:, ndf]                            # (ndf,)

    mean = (w2_t @ sum_h1) / m                        # (ndf2,)
    sumsq = jnp.sum((w2_t @ gram) * w2_t, axis=1)     # (ndf2,) = diag(w2_t @ G @ w2_t.T)
    # TODO(synk): E[x^2]-E[x]^2 can cancel when |mean| >> std; the clamp protects the
    # rsqrt, a shifted two-pass-mean formulation would need a third sweep over x.
    var = jnp.maximum(sumsq / m - mean * mean, 0.0)   # biased variance, as PyTorch BN
    scale = gamma / jnp.sqrt(var + BN_EPS)
    shift = (beta - mean * scale).reshape(ndf2, 1).astype(jnp.float32)
    w2s_t = (w2_t * scale[:, None]).astype(jnp.bfloat16)   # BN scale folded into conv2
    w3_t = w3.T.astype(jnp.bfloat16)                  # (1, ndf2)

    # ---- Pass 2: recompute conv1->conv2 from x, BN shift + lrelu, conv3 ----
    out3 = pl.pallas_call(
        _fwd_kernel,
        out_shape=jax.ShapeDtypeStruct((n, 1, hw_pad), out_dtype),
        grid=(n, num_hw_tiles),
        in_specs=[
            pl.BlockSpec((1, c_in, tile), lambda b, t: (b, 0, t)),
            pl.BlockSpec((ndf, c_in), lambda b, t: (0, 0)),
            pl.BlockSpec((ndf, 1), lambda b, t: (0, 0)),
            pl.BlockSpec((ndf2, ndf), lambda b, t: (0, 0)),
            pl.BlockSpec((ndf2, 1), lambda b, t: (0, 0)),
            pl.BlockSpec((1, ndf2), lambda b, t: (0, 0)),
        ],
        out_specs=pl.BlockSpec((1, 1, tile), lambda b, t: (b, 0, t)),
        compiler_params=cparams,
    )(x3, w1_t, b1_c, w2s_t, shift, w3_t)

    out = out3[:, :, :hw] if hw_pad != hw else out3   # drop ragged-tile columns (no-op here)
    return out.reshape(n, 1, hh, ww)                  # NCHW, 1 channel


def init_params(key, input_nc, ndf):
    """Deterministic synthetic parameters with the shapes implied by __init__."""
    ndf2 = 2 * ndf
    k1, k2, k3, k4, k5, k6 = jax.random.split(key, 6)
    return {
        # 1x1 conv weights stored as (C_in, C_out) matrices (PyTorch: (C_out, C_in, 1, 1)).
        "w1": 0.1 * jax.random.normal(k1, (input_nc, ndf), jnp.float32),
        "b1": 0.1 * jax.random.normal(k2, (ndf,), jnp.float32),
        "w2": 0.1 * jax.random.normal(k3, (ndf, ndf2), jnp.float32),
        "gamma": 1.0 + 0.1 * jax.random.normal(k4, (ndf2,), jnp.float32),
        "beta": 0.1 * jax.random.normal(k5, (ndf2,), jnp.float32),
        "w3": 0.1 * jax.random.normal(k6, (ndf2, 1), jnp.float32),
    }


def _reference_forward(x_nchw, params):
    """Pure-JAX f32 reference of the PyTorch forward (training-mode BatchNorm)."""
    n, c, h, w = x_nchw.shape
    x = jnp.transpose(x_nchw, (0, 2, 3, 1)).reshape(-1, c)
    h1 = x @ params["w1"] + params["b1"]
    h1 = jnp.where(h1 >= 0, h1, LRELU_SLOPE * h1)
    h2 = h1 @ params["w2"]
    mean = jnp.mean(h2, axis=0)
    var = jnp.mean((h2 - mean) ** 2, axis=0)
    hb = (h2 - mean) / jnp.sqrt(var + BN_EPS) * params["gamma"] + params["beta"]
    hb = jnp.where(hb >= 0, hb, LRELU_SLOPE * hb)
    o = hb @ params["w3"]
    return o.reshape(n, h, w, 1).transpose(0, 3, 1, 2)


if __name__ == "__main__":
    batch, input_nc, spatial, ndf = 2, 4, 16, 64

    key = jax.random.PRNGKey(0)
    kx, kp = jax.random.split(key)
    x = jax.random.normal(kx, (batch, input_nc, spatial, spatial), jnp.float32)  # NCHW
    params = init_params(kp, input_nc, ndf)

    fwd = jax.jit(pixel_discriminator_forward)
    out = jax.block_until_ready(fwd(x, params))

    ref = _reference_forward(x, params)
    assert out.shape == (batch, 1, spatial, spatial), out.shape
    # bf16 MXU matmuls + bf16 output; tolerance covers the ~0.5-1% mixed-precision
    # rounding (pass-1 stats and pass-2 values round differently).
    assert jnp.allclose(out.astype(jnp.float32), ref, atol=5e-2, rtol=5e-2), \
        "mismatch vs pure-JAX reference"

    print("KERNEL_OK")
</pallas_src>

<mosaic_0001>
module attributes {stable_mosaic.version = 11 : i64} {
  func.func @_stats_kernel(%arg0: i32, %arg1: i32, %arg2: memref<1x4x256xf32, #tpu.memory_space<vmem>>, %arg3: memref<64x4xbf16, #tpu.memory_space<vmem>>, %arg4: memref<64x1xf32, #tpu.memory_space<vmem>>, %arg5: memref<1x1x64x65xf32, #tpu.memory_space<vmem>>) attributes {dimension_semantics = [#tpu.dimension_semantics<parallel>, #tpu.dimension_semantics<parallel>], iteration_bounds = array<i64: 2, 1>, scalar_prefetch = 0 : i64, scratch_operands = 0 : i64, tpu.core_type = #tpu.core_type<tc>, window_params = [{transform_indices = @transform_0, window_bounds = array<i64: 1, 4, 256>}, {pipeline_mode = #tpu.pipeline_mode<synchronous>, transform_indices = @transform_1, window_bounds = array<i64: 64, 4>}, {pipeline_mode = #tpu.pipeline_mode<synchronous>, transform_indices = @transform_2, window_bounds = array<i64: 64, 1>}, {transform_indices = @transform_3, window_bounds = array<i64: 1, 1, 64, 65>}]} {
    %c0 = arith.constant 0 : index
    %c0_0 = arith.constant 0 : index
    %c0_1 = arith.constant 0 : index
    %0 = vector.load %arg2[%c0, %c0_0, %c0_1] : memref<1x4x256xf32, #tpu.memory_space<vmem>>, vector<1x4x256xf32>
    %1 = vector.shape_cast %0 : vector<1x4x256xf32> to vector<4x256xf32>
    %2 = arith.truncf %1 : vector<4x256xf32> to vector<4x256xbf16>
    %c0_2 = arith.constant 0 : index
    %c0_3 = arith.constant 0 : index
    %3 = vector.load %arg3[%c0_2, %c0_3] : memref<64x4xbf16, #tpu.memory_space<vmem>>, vector<64x4xbf16>
    %cst = arith.constant dense<0.000000e+00> : vector<64x256xf32>
    %4 = tpu.matmul %3, %2, %cst {dimension_numbers = #tpu.dot_dimension_numbers<[1], [0], [0], [1], [0, 0, 1, 1], [], []>} : vector<64x4xbf16>, vector<4x256xbf16>, vector<64x256xf32> -> vector<64x256xf32>
    %c0_4 = arith.constant 0 : index
    %c0_5 = arith.constant 0 : index
    %5 = vector.load %arg4[%c0_4, %c0_5] : memref<64x1xf32, #tpu.memory_space<vmem>>, vector<64x1xf32>
    %6 = vector.broadcast %5 : vector<64x1xf32> to vector<64x256xf32>
    %7 = arith.addf %4, %6 : vector<64x256xf32>
    %cst_6 = arith.constant 2.000000e-01 : f32
    %8 = vector.broadcast %cst_6 : f32 to vector<64x256xf32>
    %9 = arith.mulf %8, %7 : vector<64x256xf32>
    %10 = arith.maximumf %7, %9 : vector<64x256xf32>
    %11 = arith.truncf %10 : vector<64x256xf32> to vector<64x256xbf16>
    %cst_7 = arith.constant dense<0.000000e+00> : vector<64x64xf32>
    %12 = tpu.matmul %11, %11, %cst_7 {dimension_numbers = #tpu.dot_dimension_numbers<[1], [1], [0], [0], [0, 0, 1, 0], [], []>} : vector<64x256xbf16>, vector<64x256xbf16>, vector<64x64xf32> -> vector<64x64xf32>
    %cst_8 = arith.constant dense<0.000000e+00> : vector<64xf32>
    %13 = vector.multi_reduction <add>, %10, %cst_8 [1] : vector<64x256xf32> to vector<64xf32>
    %14 = vector.shape_cast %13 : vector<64xf32> to vector<64x1xf32>
    %15 = tpu.concatenate %12, %14 in 1 : vector<64x64xf32>, vector<64x1xf32> -> vector<64x65xf32>
    %16 = vector.shape_cast %15 : vector<64x65xf32> to vector<1x1x64x65xf32>
    %c0_9 = arith.constant 0 : index
    %c0_10 = arith.constant 0 : index
    %c0_11 = arith.constant 0 : index
    %c0_12 = arith.constant 0 : index
    %17 = vector.load %arg5[%c0_9, %c0_10, %c0_11, %c0_12] : memref<1x1x64x65xf32, #tpu.memory_space<vmem>>, vector<1x1x64x65xf32>
    tpu.vector_store %arg5[%c0_9, %c0_10, %c0_11, %c0_12], %16 {strides = array<i32>} : memref<1x1x64x65xf32, #tpu.memory_space<vmem>>, vector<1x1x64x65xf32>,
    return
  }
  func.func @transform_0(%arg0: i32, %arg1: i32) -> (i32, i32, i32) {
    %c0_i32 = arith.constant 0 : i32
    %c0_i32_0 = arith.constant 0 : i32
    return %arg0, %c0_i32, %arg1 : i32, i32, i32
  }
  func.func @transform_1(%arg0: i32, %arg1: i32) -> (i32, i32) {
    %c0_i32 = arith.constant 0 : i32
    %c0_i32_0 = arith.constant 0 : i32
    %c0_i32_1 = arith.constant 0 : i32
    return %c0_i32, %c0_i32_0 : i32, i32
  }
  func.func @transform_2(%arg0: i32, %arg1: i32) -> (i32, i32) {
    %c0_i32 = arith.constant 0 : i32
    %c0_i32_0 = arith.constant 0 : i32
    %c0_i32_1 = arith.constant 0 : i32
    return %c0_i32, %c0_i32_0 : i32, i32
  }
  func.func @transform_3(%arg0: i32, %arg1: i32) -> (i32, i32, i32, i32) {
    %c0_i32 = arith.constant 0 : i32
    %c0_i32_0 = arith.constant 0 : i32
    %c0_i32_1 = arith.constant 0 : i32
    return %arg0, %arg1, %c0_i32, %c0_i32_0 : i32, i32, i32, i32
  }
}

module attributes {stable_mosaic.version = 11 : i64} {
  func.func @_fwd_kernel(%arg0: i32, %arg1: i32, %arg2: memref<1x4x256xf32, #tpu.memory_space<vmem>>, %arg3: memref<64x4xbf16, #tpu.memory_space<vmem>>, %arg4: memref<64x1xf32, #tpu.memory_space<vmem>>, %arg5: memref<128x64xbf16, #tpu.memory_space<vmem>>, %arg6: memref<128x1xf32, #tpu.memory_space<vmem>>, %arg7: memref<1x128xbf16, #tpu.memory_space<vmem>>, %arg8: memref<1x1x256xbf16, #tpu.memory_space<vmem>>) attributes {dimension_semantics = [#tpu.dimension_semantics<parallel>, #tpu.dimension_semantics<parallel>], iteration_bounds = array<i64: 2, 1>, scalar_prefetch = 0 : i64, scratch_operands = 0 : i64, tpu.core_type = #tpu.core_type<tc>, window_params = [{transform_indices = @transform_0, window_bounds = array<i64: 1, 4, 256>}, {pipeline_mode = #tpu.pipeline_mode<synchronous>, transform_indices = @transform_1, window_bounds = array<i64: 64, 4>}, {pipeline_mode = #tpu.pipeline_mode<synchronous>, transform_indices = @transform_2, window_bounds = array<i64: 64, 1>}, {pipeline_mode = #tpu.pipeline_mode<synchronous>, transform_indices = @transform_3, window_bounds = array<i64: 128, 64>}, {pipeline_mode = #tpu.pipeline_mode<synchronous>, transform_indices = @transform_4, window_bounds = array<i64: 128, 1>}, {pipeline_mode = #tpu.pipeline_mode<synchronous>, transform_indices = @transform_5, window_bounds = array<i64: 1, 128>}, {transform_indices = @transform_6, window_bounds = array<i64: 1, 1, 256>}]} {
    %c0 = arith.constant 0 : index
    %c0_0 = arith.constant 0 : index
    %c0_1 = arith.constant 0 : index
    %0 = vector.load %arg2[%c0, %c0_0, %c0_1] : memref<1x4x256xf32, #tpu.memory_space<vmem>>, vector<1x4x256xf32>
    %1 = vector.shape_cast %0 : vector<1x4x256xf32> to vector<4x256xf32>
    %2 = arith.truncf %1 : vector<4x256xf32> to vector<4x256xbf16>
    %c0_2 = arith.constant 0 : index
    %c0_3 = arith.constant 0 : index
    %3 = vector.load %arg3[%c0_2, %c0_3] : memref<64x4xbf16, #tpu.memory_space<vmem>>, vector<64x4xbf16>
    %cst = arith.constant dense<0.000000e+00> : vector<64x256xf32>
    %4 = tpu.matmul %3, %2, %cst {dimension_numbers = #tpu.dot_dimension_numbers<[1], [0], [0], [1], [0, 0, 1, 1], [], []>} : vector<64x4xbf16>, vector<4x256xbf16>, vector<64x256xf32> -> vector<64x256xf32>
    %c0_4 = arith.constant 0 : index
    %c0_5 = arith.constant 0 : index
    %5 = vector.load %arg4[%c0_4, %c0_5] : memref<64x1xf32, #tpu.memory_space<vmem>>, vector<64x1xf32>
    %6 = vector.broadcast %5 : vector<64x1xf32> to vector<64x256xf32>
    %7 = arith.addf %4, %6 : vector<64x256xf32>
    %cst_6 = arith.constant 2.000000e-01 : f32
    %8 = vector.broadcast %cst_6 : f32 to vector<64x256xf32>
    %9 = arith.mulf %8, %7 : vector<64x256xf32>
    %10 = arith.maximumf %7, %9 : vector<64x256xf32>
    %11 = arith.truncf %10 : vector<64x256xf32> to vector<64x256xbf16>
    %c0_7 = arith.constant 0 : index
    %c0_8 = arith.constant 0 : index
    %12 = vector.load %arg5[%c0_7, %c0_8] : memref<128x64xbf16, #tpu.memory_space<vmem>>, vector<128x64xbf16>
    %cst_9 = arith.constant dense<0.000000e+00> : vector<128x256xf32>
    %13 = tpu.matmul %12, %11, %cst_9 {dimension_numbers = #tpu.dot_dimension_numbers<[1], [0], [0], [1], [0, 0, 1, 1], [], []>} : vector<128x64xbf16>, vector<64x256xbf16>, vector<128x256xf32> -> vector<128x256xf32>
    %c0_10 = arith.constant 0 : index
    %c0_11 = arith.constant 0 : index
    %14 = vector.load %arg6[%c0_10, %c0_11] : memref<128x1xf32, #tpu.memory_space<vmem>>, vector<128x1xf32>
    %15 = vector.broadcast %14 : vector<128x1xf32> to vector<128x256xf32>
    %16 = arith.addf %13, %15 : vector<128x256xf32>
    %cst_12 = arith.constant 2.000000e-01 : f32
    %17 = vector.broadcast %cst_12 : f32 to vector<128x256xf32>
    %18 = arith.mulf %17, %16 : vector<128x256xf32>
    %19 = arith.maximumf %16, %18 : vector<128x256xf32>
    %20 = arith.truncf %19 : vector<128x256xf32> to vector<128x256xbf16>
    %c0_13 = arith.constant 0 : index
    %c0_14 = arith.constant 0 : index
    %21 = vector.load %arg7[%c0_13, %c0_14] : memref<1x128xbf16, #tpu.memory_space<vmem>>, vector<1x128xbf16>
    %cst_15 = arith.constant dense<0.000000e+00> : vector<1x256xf32>
    %22 = tpu.matmul %21, %20, %cst_15 {dimension_numbers = #tpu.dot_dimension_numbers<[1], [0], [0], [1], [0, 0, 1, 1], [], []>} : vector<1x128xbf16>, vector<128x256xbf16>, vector<1x256xf32> -> vector<1x256xf32>
    %23 = vector.shape_cast %22 : vector<1x256xf32> to vector<1x1x256xf32>
    %24 = arith.truncf %23 : vector<1x1x256xf32> to vector<1x1x256xbf16>
    %c0_16 = arith.constant 0 : index
    %c0_17 = arith.constant 0 : index
    %c0_18 = arith.constant 0 : index
    %25 = vector.load %arg8[%c0_16, %c0_17, %c0_18] : memref<1x1x256xbf16, #tpu.memory_space<vmem>>, vector<1x1x256xbf16>
    tpu.vector_store %arg8[%c0_16, %c0_17, %c0_18], %24 {strides = array<i32>} : memref<1x1x256xbf16, #tpu.memory_space<vmem>>, vector<1x1x256xbf16>,
    return
  }
  func.func @transform_0(%arg0: i32, %arg1: i32) -> (i32, i32, i32) {
    %c0_i32 = arith.constant 0 : i32
    %c0_i32_0 = arith.constant 0 : i32
    return %arg0, %c0_i32, %arg1 : i32, i32, i32
  }
  func.func @transform_1(%arg0: i32, %arg1: i32) -> (i32, i32) {
    %c0_i32 = arith.constant 0 : i32
    %c0_i32_0 = arith.constant 0 : i32
    %c0_i32_1 = arith.constant 0 : i32
    return %c0_i32, %c0_i32_0 : i32, i32
  }
  func.func @transform_2(%arg0: i32, %arg1: i32) -> (i32, i32) {
    %c0_i32 = arith.constant 0 : i32
    %c0_i32_0 = arith.constant 0 : i32
    %c0_i32_1 = arith.constant 0 : i32
    return %c0_i32, %c0_i32_0 : i32, i32
  }
  func.func @transform_3(%arg0: i32, %arg1: i32) -> (i32, i32) {
    %c0_i32 = arith.constant 0 : i32
    %c0_i32_0 = arith.constant 0 : i32
    %c0_i32_1 = arith.constant 0 : i32
    return %c0_i32, %c0_i32_0 : i32, i32
  }
  func.func @transform_4(%arg0: i32, %arg1: i32) -> (i32, i32) {
    %c0_i32 = arith.constant 0 : i32
    %c0_i32_0 = arith.constant 0 : i32
    %c0_i32_1 = arith.constant 0 : i32
    return %c0_i32, %c0_i32_0 : i32, i32
  }
  func.func @transform_5(%arg0: i32, %arg1: i32) -> (i32, i32) {
    %c0_i32 = arith.constant 0 : i32
    %c0_i32_0 = arith.constant 0 : i32
    %c0_i32_1 = arith.constant 0 : i32
    return %c0_i32, %c0_i32_0 : i32, i32
  }
  func.func @transform_6(%arg0: i32, %arg1: i32) -> (i32, i32, i32) {
    %c0_i32 = arith.constant 0 : i32
    %c0_i32_0 = arith.constant 0 : i32
    return %arg0, %c0_i32, %arg1 : i32, i32, i32
  }
}

</mosaic_0001>

<llo_original>
// kernel: pixel_discriminator_forward.2
$region0: #{pixel_discriminator_forward.2}
  #allocation0 [shape = 'u32[]', space=smem, size = 0x4, offset = 0x4, fixed_abs, tag = 'smem constant byte address 0x4 - core index']
  #allocation1 [shape = 'u32[72,128]{1,0:T(1,128)}', space=vmem, size = 0x9000, scoped, tag = 'internal scratch']
  %s0 = inlined_call_operand.vmem [shape: f32[2,4,256], index: 0, kind: input, shape index: {}]
  %s1 = inlined_call_operand.vmem [shape: bf16[64,4], index: 1, kind: input, shape index: {}]
  %s2 = inlined_call_operand.vmem [shape: f32[64,1], index: 2, kind: input, shape index: {}]
  %s3 = inlined_call_operand.vmem [shape: f32[2,1,64,65], index: 3, kind: output, shape index: {}]
  %s4 = sld [smem:[#allocation0]]
  $region45: #{pixel_discriminator_forward.2} parent=0
    _
  %s6 = ssub.s32 1, %s4
  %s7 = scalar_select 0, %s6, %s4
  loop: start=0, step=1, limit=4
  $region2: #{pixel_discriminator_forward.2} parent=0 // loop_pre_header
    _
  $region3: #{pixel_discriminator_forward.2} parent=0 // loop_header
    %s9 = sphi 0, %s13
    %p10 = scmp.ge.s32.totalorder %s9, 4
    %s16 = sphi 0, %s28
    %s17 = sphi 0, %s24
    %s18 = sphi 0, %s16
    %s19 = sphi 0, %s17
    %s20 = sphi 0, %s18
    %s21 = sphi 0, %s19
    %s33 = sphi 0, %s35
    %s36 = sphi 0, %s33
    %s37 = sphi 0, %s36
    %s53 = sphi 0, %s37
    %s57 = sphi 0, %s57
    %s59 = sphi 0, %s57
    %s60 = sphi 0, %s59
    %s74 = sphi 0, %s60
    %s78 = sphi 0, %s78
    %s80 = sphi 0, %s78
    %s81 = sphi 0, %s80
    %s95 = sphi 0, %s81
    %s103 = sphi 0, %s105
    %s106 = sphi 0, %s103
    %s107 = sphi 0, %s106
    %s123 = sphi 0, %s107
  $region4: #{pixel_discriminator_forward.2} parent=0 // loop_header_branch
    %12 = sbr.rel (%p10) target = $region8
  $region5: #{pixel_discriminator_forward.2} parent=0 // loop_body
    %s14 = ssub.s32 %s9, 1
    %s15 = ssub.s32 %s9, 2
    %s22 = sadd.s32 1, %s17
    %p23 = scmp.ge.s32.totalorder %s22, 1
    %s24 = scalar_select %p23, 0, %s22
    %s25 = sadd.s32 1, %s16
    %s26 = scalar_select %p23, %s25, %s16
    %p27 = scmp.ge.s32.totalorder %s26, 2
    %s28 = scalar_select %p27, 0, %s26
    %s29 = ssub.s32 %s16, %s28
    %s30 = ssub.s32 %s17, %s24
    %s31 = sor.u32 %s29, %s30
    %p32 = scmp.eq.s32.totalorder %s31, 0
    %s34 = sadd.s32 %s33, 1
    %s35 = scalar_select %p32, %s33, %s34
    %p38 = pneg %p32
    %p39 = scmp.eq.s32.totalorder %s9, 1
    %p40 = por %p38, %p39
    %p41 = scmp.ne.s32.totalorder %s33, %s36
    %p42 = scmp.eq.s32.totalorder %s9, 0
    %p43 = por %p41, %p42
    %p44 = scmp.ne.s32.totalorder %s33, %s36
    %p45 = scmp.eq.s32.totalorder %s14, 1
    %p46 = por %p44, %p45
    %p47 = scmp.ne.s32.totalorder %s36, %s37
    %p48 = scmp.eq.s32.totalorder %s14, 0
    %p49 = por %p47, %p48
    %p50 = scmp.ne.s32.totalorder %s36, %s37
    %p51 = scmp.eq.s32.totalorder %s15, 1
    %p52 = por %p50, %p51
    %p54 = scmp.ne.s32.totalorder %s37, %s53
    %p55 = scmp.eq.s32.totalorder %s15, 0
    %p56 = por %p54, %p55
    %s58 = sadd.s32 %s57, 1
    %p61 = scmp.eq.s32.totalorder %s9, 1
    %p62 = scmp.ne.s32.totalorder %s57, %s59
    %p63 = scmp.eq.s32.totalorder %s9, 0
    %p64 = por %p62, %p63
    %p65 = scmp.ne.s32.totalorder %s57, %s59
    %p66 = scmp.eq.s32.totalorder %s14, 1
    %p67 = por %p65, %p66
    %p68 = scmp.ne.s32.totalorder %s59, %s60
    %p69 = scmp.eq.s32.totalorder %s14, 0
    %p70 = por %p68, %p69
    %p71 = scmp.ne.s32.totalorder %s59, %s60
    %p72 = scmp.eq.s32.totalorder %s15, 1
    %p73 = por %p71, %p72
    %p75 = scmp.ne.s32.totalorder %s60, %s74
    %p76 = scmp.eq.s32.totalorder %s15, 0
    %p77 = por %p75, %p76
    %s79 = sadd.s32 %s78, 1
    %p82 = scmp.eq.s32.totalorder %s9, 1
    %p83 = scmp.ne.s32.totalorder %s78, %s80
    %p84 = scmp.eq.s32.totalorder %s9, 0
    %p85 = por %p83, %p84
    %p86 = scmp.ne.s32.totalorder %s78, %s80
    %p87 = scmp.eq.s32.totalorder %s14, 1
    %p88 = por %p86, %p87
    %p89 = scmp.ne.s32.totalorder %s80, %s81
    %p90 = scmp.eq.s32.totalorder %s14, 0
    %p91 = por %p89, %p90
    %p92 = scmp.ne.s32.totalorder %s80, %s81
    %p93 = scmp.eq.s32.totalorder %s15, 1
    %p94 = por %p92, %p93
    %p96 = scmp.ne.s32.totalorder %s81, %s95
    %p97 = scmp.eq.s32.totalorder %s15, 0
    %p98 = por %p96, %p97
    %s99 = ssub.s32 %s16, %s28
    %s100 = ssub.s32 %s17, %s24
    %s101 = sor.u32 %s99, %s100
    %p102 = scmp.eq.s32.totalorder %s101, 0
    %s104 = sadd.s32 %s103, 1
    %s105 = scalar_select %p102, %s103, %s104
    %p108 = pneg %p102
    %p109 = scmp.eq.s32.totalorder %s9, 1
    %p110 = por %p108, %p109
    %p111 = scmp.ne.s32.totalorder %s103, %s106
    %p112 = scmp.eq.s32.totalorder %s9, 0
    %p113 = por %p111, %p112
    %p114 = scmp.ne.s32.totalorder %s103, %s106
    %p115 = scmp.eq.s32.totalorder %s14, 1
    %p116 = por %p114, %p115
    %p117 = scmp.ne.s32.totalorder %s106, %s107
    %p118 = scmp.eq.s32.totalorder %s14, 0
    %p119 = por %p117, %p118
    %p120 = scmp.ne.s32.totalorder %s106, %s107
    %p121 = scmp.eq.s32.totalorder %s15, 1
    %p122 = por %p120, %p121
    %p124 = scmp.ne.s32.totalorder %s107, %s123
    %p125 = scmp.eq.s32.totalorder %s15, 0
    %p126 = por %p124, %p125
    %p127 = scmp.le.s32.totalorder 1, %s9
    %p128 = scmp.lt.s32.totalorder %s9, 3
    %p129 = pnand %p127, %p128
    %p130 = pneg %p129
    // Predicated region
    $region9: #{pixel_discriminator_forward.2} parent=5 // pred_check
      _
    $region10: #{pixel_discriminator_forward.2} parent=5 // pred_check_branch
      %132 = sbr.rel (%p129) target = $region12
    $region11: #{pixel_discriminator_forward.2} parent=5 // pred_region
      %s133 = ssub.s32 %s9, 1
      // Predicated region
      $region13: #{pixel_discriminator_forward.2} parent=11 // pred_check
        %p134 = pneg %p70
      $region14: #{pixel_discriminator_forward.2} parent=11 // pred_check_branch
        %136 = sbr.rel (%p134) target = $region16
      $region15: #{pixel_discriminator_forward.2} parent=11 // pred_region
        _
      $region16: #{pixel_discriminator_forward.2} parent=11 // pred_fallthru
        _
      // Predicated region
      $region17: #{pixel_discriminator_forward.2} parent=11 // pred_check
        %p137 = pneg %p91
      $region18: #{pixel_discriminator_forward.2} parent=11 // pred_check_branch
        %139 = sbr.rel (%p137) target = $region20
      $region19: #{pixel_discriminator_forward.2} parent=11 // pred_region
        _
      $region20: #{pixel_discriminator_forward.2} parent=11 // pred_fallthru
        _
    $region12: #{pixel_discriminator_forward.2} parent=5 // pred_fallthru
      _
    %p140 = scmp.lt.s32.totalorder %s9, 2
    // Predicated region
    $region21: #{pixel_discriminator_forward.2} parent=5 // pred_check
      %p141 = pneg %p140
    $region22: #{pixel_discriminator_forward.2} parent=5 // pred_check_branch
      %143 = sbr.rel (%p141) target = $region24
    $region23: #{pixel_discriminator_forward.2} parent=5 // pred_region
      // Predicated region
      $region25: #{pixel_discriminator_forward.2} parent=23 // pred_check
        %p144 = pneg %p43
      $region26: #{pixel_discriminator_forward.2} parent=23 // pred_check_branch
        %146 = sbr.rel (%p144) target = $region28
      $region27: #{pixel_discriminator_forward.2} parent=23 // pred_region
        %s147 = smul.u32 2, %s17
        %p148 = scmp.lt.s32.totalorder %s16, 1
        %s149 = scalar_select %p148, %s16, 1
        %p150 = scmp.lt.s32.totalorder %s147, 1
        %s151 = scalar_select %p150, %s147, 1
        %s152 = smul.addr %s149, 2
        %s153 = sadd.s32 %s151, %s152
        %s154 = smul.addr %s153, 4
        %s155 = scalar_lea.vmem %s0, %s154
        %s156 = smul.u32 2, %s17
      $region28: #{pixel_discriminator_forward.2} parent=23 // pred_fallthru
        _
    $region24: #{pixel_discriminator_forward.2} parent=5 // pred_fallthru
      _
    %p157 = scmp.le.s32.totalorder 1, %s9
    %p158 = scmp.lt.s32.totalorder %s9, 3
    %p159 = pnand %p157, %p158
    %p160 = pneg %p159
    // Predicated region
    $region29: #{pixel_discriminator_forward.2} parent=5 // pred_check
      _
    $region30: #{pixel_discriminator_forward.2} parent=5 // pred_check_branch
      %162 = sbr.rel (%p159) target = $region32
    $region31: #{pixel_discriminator_forward.2} parent=5 // pred_region
      %s163 = ssub.s32 %s9, 1
      %s164 = smul.u32 2, %s19
      %p165 = scmp.lt.s32.totalorder %s18, 1
      %s166 = scalar_select %p165, %s18, 1
      %p167 = scmp.lt.s32.totalorder %s164, 1
      %s168 = scalar_select %p167, %s164, 1
      %s169 = smul.addr %s166, 2
      %s170 = sadd.s32 %s168, %s169
      %s171 = smul.addr %s170, 4
      %s172 = scalar_lea.vmem %s0, %s171
      %p173 = pneg %p49
      %p174 = pneg %p46
      %p175 = pneg %p70
      %p176 = pneg %p67
      %p177 = pneg %p91
      %p178 = pneg %p88
      %p179 = pneg %p119
      %p180 = pneg %p116
      %p181 = scmp.lt.s32.totalorder %s18, 1
      %s182 = scalar_select %p181, %s18, 1
      %p183 = scmp.lt.s32.totalorder %s19, 0
      %s184 = scalar_select %p183, %s19, 0
      %s185 = smul.addr %s184, 8
      %s186 = smul.addr %s182, 8
      %s187 = sadd.s32 %s185, %s186
      %s188 = smul.addr %s187, 8
      %s189 = scalar_lea.vmem %s3, %s188
      %s190 = smul.u32 2, %s19
      %p191 = scmp.lt.s32.totalorder %s18, 1
      %s192 = scalar_select %p191, %s18, 1
      %p193 = scmp.lt.s32.totalorder %s190, 1
      %s194 = scalar_select %p193, %s190, 1
      %s195 = smul.addr %s192, 2
      %s196 = sadd.s32 %s194, %s195
      %s197 = smul.addr %s196, 4
      %s198 = scalar_lea.vmem %s0, %s197
      %s199 = smul.u32 2, %s19
      %p200 = scmp.lt.s32.totalorder %s18, 1
      %s201 = scalar_select %p200, %s18, 1
      %p202 = scmp.lt.s32.totalorder %s19, 0
      %s203 = scalar_select %p202, %s19, 0
      %s204 = smul.addr %s203, 8
      %s205 = smul.addr %s201, 8
      %s206 = sadd.s32 %s204, %s205
      %s207 = smul.addr %s206, 8
      %s208 = scalar_lea.vmem %s3, %s207
      %v210 = vld [vmem:[%s198] sm:$0xff]
      %212 = vst [vmem:[#allocation1] ss:$2 sm:$0xff] %v210
      %v213 = vld.sshfl [vmem:[#allocation1] sm:$0xff pattern:$0x75316420]
      %v214 = vld.sshfl [vmem:[#allocation1 + $0x8] sm:$0xff pattern:$0x75316420]
      %v217 = vpack.c.bf16 %v213, %v213
      %v218 = vpack.c.bf16 %v214, %v214
      %v219 = vld [vmem:[%s1] sm:$0xf]
      %v220 = vld [vmem:[%s1 + $0x4] sm:$0xf]
      %v221 = vld [vmem:[%s1 + $0x8] sm:$0xf]
      %v222 = vld [vmem:[%s1 + $0xc] sm:$0xf]
      %v223 = vld [vmem:[%s1 + $0x10] sm:$0xf]
      %v224 = vld [vmem:[%s1 + $0x14] sm:$0xf]
      %v225 = vld [vmem:[%s1 + $0x18] sm:$0xf]
      %v226 = vld [vmem:[%s1 + $0x1c] sm:$0xf]
      %v227 = vld [vmem:[%s2] sm:$0xff]
      %v228 = vld [vmem:[%s2 + $0x8] sm:$0xff]
      %v229 = vld [vmem:[%s2 + $0x10] sm:$0xff]
      %v230 = vld [vmem:[%s2 + $0x18] sm:$0xff]
      %v231 = vld [vmem:[%s2 + $0x20] sm:$0xff]
      %v232 = vld [vmem:[%s2 + $0x28] sm:$0xff]
      %v233 = vld [vmem:[%s2 + $0x30] sm:$0xff]
      %v234 = vld [vmem:[%s2 + $0x38] sm:$0xff]
      %236 = vset.pattern.permute.xlu0 0
      %237 = vperm.xlu0 %236, %v227
      %v238 = vpop.permute.xlu0 %237
      %241 = vset.pattern.permute.xlu0 0
      %242 = vperm.xlu0 %241, %v228
      %v243 = vpop.permute.xlu0 %242
      %246 = vset.pattern.permute.xlu0 0
      %247 = vperm.xlu0 %246, %v229
      %v248 = vpop.permute.xlu0 %247
      %251 = vset.pattern.permute.xlu0 0
      %252 = vperm.xlu0 %251, %v230
      %v253 = vpop.permute.xlu0 %252
      %256 = vset.pattern.permute.xlu0 0
      %257 = vperm.xlu0 %256, %v231
      %v258 = vpop.permute.xlu0 %257
      %261 = vset.pattern.permute.xlu0 0
      %262 = vperm.xlu0 %261, %v232
      %v263 = vpop.permute.xlu0 %262
      %266 = vset.pattern.permute.xlu0 0
      %267 = vperm.xlu0 %266, %v233
      %v268 = vpop.permute.xlu0 %267
      %271 = vset.pattern.permute.xlu0 0
      %272 = vperm.xlu0 %271, %v234
      %v273 = vpop.permute.xlu0 %272
      %v283 = vunpack.c.l.b16 %v219
      %v284 = vunpack.c.l.b16 %v220
      %v285 = vunpack.c.l.b16 %v221
      %v286 = vunpack.c.l.b16 %v222
      %v287 = vunpack.c.l.b16 %v223
      %v288 = vunpack.c.l.b16 %v224
      %v289 = vunpack.c.l.b16 %v225
      %v290 = vunpack.c.l.b16 %v226
      %v291 = vpack.c.b16 %v284, %v283
      %v292 = vpack.c.b16 %v286, %v285
      %v293 = vpack.c.b16 %v288, %v287
      %v294 = vpack.c.b16 %v290, %v289
      %vm295 = vcmask 31744
      %v297 = vsel %vm295, %v291, 0
      %v300 = vsel %vm295, %v292, 0
      %v303 = vsel %vm295, %v293, 0
      %v306 = vsel %vm295, %v294, 0
      %vm308 = vcmask 1041408
      %v310 = vsel %vm308, %v217, 0
      %v313 = vsel %vm308, %v218, 0
      %315 = vmatpush.bf16.msra.mxu0 0
      %316 = vmatpush.bf16.msra.mxu0 0
      %317 = vmatpush.bf16.msra.mxu0 0
      %318 = vmatpush.bf16.msra.mxu0 0
      %319 = vmatpush.bf16.msra.mxu0 0
      %320 = vmatpush.bf16.msra.mxu0 0
      %321 = vmatpush.bf16.msra.mxu0 0
      %322 = vmatpush.bf16.msra.mxu0 %v310
      %323 = vmatmul.bf16.gmra.mxu0 %v297
      %v324 = vpop.f32.mrf.mxu0
      %v325 = vadd.f32 %v238, %v324
      %v326 = vpop.f32.mrf.mxu0
      %v327 = vadd.f32 %v243, %v326
      %328 = vmatmul.bf16.gmra.mxu0 %v300
      %v329 = vpop.f32.mrf.mxu0
      %v330 = vadd.f32 %v248, %v329
      %v331 = vpop.f32.mrf.mxu0
      %v332 = vadd.f32 %v253, %v331
      %333 = vmatmul.bf16.gmra.mxu0 %v303
      %v334 = vpop.f32.mrf.mxu0
      %v335 = vadd.f32 %v258, %v334
      %v336 = vpop.f32.mrf.mxu0
      %v337 = vadd.f32 %v263, %v336
      %338 = vmatmul.bf16.gmra.mxu0 %v306
      %v339 = vpop.f32.mrf.mxu0
      %v340 = vadd.f32 %v268, %v339
      %v341 = vpop.f32.mrf.mxu0
      %v342 = vadd.f32 %v273, %v341
      %343 = vdwg.mxu0
      %344 = vmatpush.bf16.msra.mxu0 0
      %345 = vmatpush.bf16.msra.mxu0 0
      %346 = vmatpush.bf16.msra.mxu0 0
      %347 = vmatpush.bf16.msra.mxu0 0
      %348 = vmatpush.bf16.msra.mxu0 0
      %349 = vmatpush.bf16.msra.mxu0 0
      %350 = vmatpush.bf16.msra.mxu0 0
      %351 = vmatpush.bf16.msra.mxu0 %v313
      %352 = vmatmul.bf16.gmra.mxu0 %v297
      %v353 = vpop.f32.mrf.mxu0
      %v354 = vadd.f32 %v238, %v353
      %v355 = vpop.f32.mrf.mxu0
      %v356 = vadd.f32 %v243, %v355
      %357 = vmatmul.bf16.gmra.mxu0 %v300
      %v358 = vpop.f32.mrf.mxu0
      %v359 = vadd.f32 %v248, %v358
      %v360 = vpop.f32.mrf.mxu0
      %v361 = vadd.f32 %v253, %v360
      %362 = vmatmul.bf16.gmra.mxu0 %v303
      %v363 = vpop.f32.mrf.mxu0
      %v364 = vadd.f32 %v258, %v363
      %v365 = vpop.f32.mrf.mxu0
      %v366 = vadd.f32 %v263, %v365
      %367 = vmatmul.bf16.gmra.mxu0 %v306
      %v368 = vpop.f32.mrf.mxu0
      %v369 = vadd.f32 %v268, %v368
      %v370 = vpop.f32.mrf.mxu0
      %v371 = vadd.f32 %v273, %v370
      %372 = vdwg.mxu0
      %v373 = vmul.f32 %v325, 0.2
      %v374 = vmul.f32 %v354, 0.2
      %v375 = vmul.f32 %v327, 0.2
      %v376 = vmul.f32 %v356, 0.2
      %v377 = vmul.f32 %v330, 0.2
      %v378 = vmul.f32 %v359, 0.2
      %v379 = vmul.f32 %v332, 0.2
      %v380 = vmul.f32 %v361, 0.2
      %v381 = vmul.f32 %v335, 0.2
      %v382 = vmul.f32 %v364, 0.2
      %v383 = vmul.f32 %v337, 0.2
      %v384 = vmul.f32 %v366, 0.2
      %v385 = vmul.f32 %v340, 0.2
      %v386 = vmul.f32 %v369, 0.2
      %v387 = vmul.f32 %v342, 0.2
      %v388 = vmul.f32 %v371, 0.2
      %v389 = vmax.f32 %v325, %v373
      %v390 = vmax.f32 %v354, %v374
      %v391 = vmax.f32 %v327, %v375
      %v392 = vmax.f32 %v356, %v376
      %v393 = vmax.f32 %v330, %v377
      %v394 = vmax.f32 %v359, %v378
      %v395 = vmax.f32 %v332, %v379
      %v396 = vmax.f32 %v361, %v380
      %v397 = vmax.f32 %v335, %v381
      %v398 = vmax.f32 %v364, %v382
      %v399 = vmax.f32 %v337, %v383
      %v400 = vmax.f32 %v366, %v384
      %v401 = vmax.f32 %v340, %v385
      %v402 = vmax.f32 %v369, %v386
      %v403 = vmax.f32 %v342, %v387
      %v404 = vmax.f32 %v371, %v388
      %v405 = vpack.c.bf16 %v391, %v389
      %v406 = vpack.c.bf16 %v392, %v390
      %v407 = vpack.c.bf16 %v395, %v393
      %v408 = vpack.c.bf16 %v396, %v394
      %v409 = vpack.c.bf16 %v399, %v397
      %v410 = vpack.c.bf16 %v400, %v398
      %v411 = vpack.c.bf16 %v403, %v401
      %v412 = vpack.c.bf16 %v404, %v402
      %413 = vmatpush.bf16.xpose.msra.mxu0 0
      %414 = vmatpush.bf16.xpose.msra.mxu0 0
      %415 = vmatpush.bf16.xpose.msra.mxu0 0
      %416 = vmatpush.bf16.xpose.msra.mxu0 0
      %417 = vmatpush.bf16.xpose.msra.mxu0 %v411
      %418 = vmatpush.bf16.xpose.msra.mxu0 %v409
      %419 = vmatpush.bf16.xpose.msra.mxu0 %v407
      %420 = vmatpush.bf16.xpose.msra.mxu0 %v405
      %421 = vmatmul.bf16.gmra.mxu0 %v405
      %v422 = vpop.f32.mrf.mxu0
      %v423 = vadd.f32 0.0, %v422
      %v424 = vpop.f32.mrf.mxu0
      %v425 = vadd.f32 0.0, %v424
      %426 = vmatmul.bf16.gmra.mxu0 %v407
      %v427 = vpop.f32.mrf.mxu0
      %v428 = vadd.f32 0.0, %v427
      %v429 = vpop.f32.mrf.mxu0
      %v430 = vadd.f32 0.0, %v429
      %431 = vmatmul.bf16.gmra.mxu0 %v409
      %v432 = vpop.f32.mrf.mxu0
      %v433 = vadd.f32 0.0, %v432
      %v434 = vpop.f32.mrf.mxu0
      %v435 = vadd.f32 0.0, %v434
      %436 = vmatmul.bf16.gmra.mxu0 %v411
      %v437 = vpop.f32.mrf.mxu0
      %v438 = vadd.f32 0.0, %v437
      %v439 = vpop.f32.mrf.mxu0
      %v440 = vadd.f32 0.0, %v439
      %441 = vdwg.mxu0
      %442 = vmatpush.bf16.xpose.msra.mxu0 0
      %443 = vmatpush.bf16.xpose.msra.mxu0 0
      %444 = vmatpush.bf16.xpose.msra.mxu0 0
      %445 = vmatpush.bf16.xpose.msra.mxu0 0
      %446 = vmatpush.bf16.xpose.msra.mxu0 %v412
      %447 = vmatpush.bf16.xpose.msra.mxu0 %v410
      %448 = vmatpush.bf16.xpose.msra.mxu0 %v408
      %449 = vmatpush.bf16.xpose.msra.mxu0 %v406
      %450 = vmatmul.bf16.gmra.mxu0 %v406
      %v451 = vpop.f32.mrf.mxu0
      %v452 = vadd.f32 %v423, %v451
      %v453 = vpop.f32.mrf.mxu0
      %v454 = vadd.f32 %v425, %v453
      %455 = vmatmul.bf16.gmra.mxu0 %v408
      %v456 = vpop.f32.mrf.mxu0
      %v457 = vadd.f32 %v428, %v456
      %v458 = vpop.f32.mrf.mxu0
      %v459 = vadd.f32 %v430, %v458
      %460 = vmatmul.bf16.gmra.mxu0 %v410
      %v461 = vpop.f32.mrf.mxu0
      %v462 = vadd.f32 %v433, %v461
      %v463 = vpop.f32.mrf.mxu0
      %v464 = vadd.f32 %v435, %v463
      %465 = vmatmul.bf16.gmra.mxu0 %v412
      %v466 = vpop.f32.mrf.mxu0
      %v467 = vadd.f32 %v438, %v466
      %v468 = vpop.f32.mrf.mxu0
      %v469 = vadd.f32 %v440, %v468
      %470 = vdwg.mxu0
      %v471 = vadd.f32 %v389, %v390
      %472 = vadd.xlane.f32.xlu0 %v471
      %v473 = vpop.xlane.xlu0 %472
      %v474 = vadd.f32 %v391, %v392
      %475 = vadd.xlane.f32.xlu0 %v474
      %v476 = vpop.xlane.xlu0 %475
      %v477 = vadd.f32 %v393, %v394
      %478 = vadd.xlane.f32.xlu0 %v477
      %v479 = vpop.xlane.xlu0 %478
      %v480 = vadd.f32 %v395, %v396
      %481 = vadd.xlane.f32.xlu0 %v480
      %v482 = vpop.xlane.xlu0 %481
      %v483 = vadd.f32 %v397, %v398
      %484 = vadd.xlane.f32.xlu0 %v483
      %v485 = vpop.xlane.xlu0 %484
      %v486 = vadd.f32 %v399, %v400
      %487 = vadd.xlane.f32.xlu0 %v486
      %v488 = vpop.xlane.xlu0 %487
      %v489 = vadd.f32 %v401, %v402
      %490 = vadd.xlane.f32.xlu0 %v489
      %v491 = vpop.xlane.xlu0 %490
      %v492 = vadd.f32 %v403, %v404
      %493 = vadd.xlane.f32.xlu0 %v492
      %v494 = vpop.xlane.xlu0 %493
      %vm495 = vcmask 523264
      %v496 = vsel %vm495, %v452, %v473
      %v497 = vsel %vm495, %v454, %v476
      %v498 = vsel %vm495, %v457, %v479
      %v499 = vsel %vm495, %v459, %v482
      %v500 = vsel %vm495, %v462, %v485
      %v501 = vsel %vm495, %v464, %v488
      %v502 = vsel %vm495, %v467, %v491
      %v503 = vsel %vm495, %v469, %v494
      %vm504 = vcmask 531456
      %505 = vst.msk [vmem:[%s208] sm:$0xff] %vm504, %v496
      %506 = vst.msk [vmem:[%s208 + $0x8] sm:$0xff] %vm504, %v497
      %507 = vst.msk [vmem:[%s208 + $0x10] sm:$0xff] %vm504, %v498
      %508 = vst.msk [vmem:[%s208 + $0x18] sm:$0xff] %vm504, %v499
      %509 = vst.msk [vmem:[%s208 + $0x20] sm:$0xff] %vm504, %v500
      %510 = vst.msk [vmem:[%s208 + $0x28] sm:$0xff] %vm504, %v501
      %511 = vst.msk [vmem:[%s208 + $0x30] sm:$0xff] %vm504, %v502
      %512 = vst.msk [vmem:[%s208 + $0x38] sm:$0xff] %vm504, %v503
      %p513 = scmp.lt.s32.totalorder %s18, 1
      %s514 = scalar_select %p513, %s18, 1
      %p515 = scmp.lt.s32.totalorder %s19, 0
      %s516 = scalar_select %p515, %s19, 0
      %s517 = smul.addr %s516, 8
      %s518 = smul.addr %s514, 8
      %s519 = sadd.s32 %s517, %s518
      %s520 = smul.addr %s519, 8
      %s521 = scalar_lea.vmem %s3, %s520
      // Predicated region
      $region33: #{pixel_discriminator_forward.2} parent=31 // pred_check
        %p522 = pneg %p116
      $region34: #{pixel_discriminator_forward.2} parent=31 // pred_check_branch
        %524 = sbr.rel (%p522) target = $region36
      $region35: #{pixel_discriminator_forward.2} parent=31 // pred_region
        _
      $region36: #{pixel_discriminator_forward.2} parent=31 // pred_fallthru
        _
    $region32: #{pixel_discriminator_forward.2} parent=5 // pred_fallthru
      _
    %p525 = scmp.le.s32.totalorder 2, %s9
    // Predicated region
    $region37: #{pixel_discriminator_forward.2} parent=5 // pred_check
      %p526 = pneg %p525
    $region38: #{pixel_discriminator_forward.2} parent=5 // pred_check_branch
      %528 = sbr.rel (%p526) target = $region40
    $region39: #{pixel_discriminator_forward.2} parent=5 // pred_region
      %s529 = ssub.s32 %s9, 2
      // Predicated region
      $region41: #{pixel_discriminator_forward.2} parent=39 // pred_check
        %p530 = pneg %p122
      $region42: #{pixel_discriminator_forward.2} parent=39 // pred_check_branch
        %532 = sbr.rel (%p530) target = $region44
      $region43: #{pixel_discriminator_forward.2} parent=39 // pred_region
        %p533 = scmp.lt.s32.totalorder %s20, 1
        %s534 = scalar_select %p533, %s20, 1
        %p535 = scmp.lt.s32.totalorder %s21, 0
        %s536 = scalar_select %p535, %s21, 0
        %s537 = smul.addr %s536, 8
        %s538 = smul.addr %s534, 8
        %s539 = sadd.s32 %s537, %s538
        %s540 = smul.addr %s539, 8
        %s541 = scalar_lea.vmem %s3, %s540
      $region44: #{pixel_discriminator_forward.2} parent=39 // pred_fallthru
        _
    $region40: #{pixel_discriminator_forward.2} parent=5 // pred_fallthru
      _
  $region6: #{pixel_discriminator_forward.2} parent=0 // loop_footer
    %s13 = sadd.s32 1, %s9
  $region7: #{pixel_discriminator_forward.2} parent=0 // loop_footer_branch
    %8 = sbr.rel target = $region3
  $region8: #{pixel_discriminator_forward.2} parent=0 // loop_exit
    _

// kernel: pixel_discriminator_forward.3
$region0: #{pixel_discriminator_forward.3}
  #allocation0 [shape = 'u32[]', space=smem, size = 0x4, offset = 0x4, fixed_abs, tag = 'smem constant byte address 0x4 - core index']
  #allocation1 [shape = 'u32[72,128]{1,0:T(1,128)}', space=vmem, size = 0x9000, scoped, tag = 'internal scratch']
  %s0 = inlined_call_operand.vmem [shape: f32[2,4,256], index: 0, kind: input, shape index: {}]
  %s1 = inlined_call_operand.vmem [shape: bf16[64,4], index: 1, kind: input, shape index: {}]
  %s2 = inlined_call_operand.vmem [shape: f32[64,1], index: 2, kind: input, shape index: {}]
  %s3 = inlined_call_operand.vmem [shape: bf16[128,64], index: 3, kind: input, shape index: {}]
  %s4 = inlined_call_operand.vmem [shape: f32[128,1], index: 4, kind: input, shape index: {}]
  %s5 = inlined_call_operand.vmem [shape: bf16[1,128], index: 5, kind: input, shape index: {}]
  %s6 = inlined_call_operand.vmem [shape: bf16[2,1,256], index: 6, kind: output, shape index: {}]
  %s7 = sld [smem:[#allocation0]]
  $region57: #{pixel_discriminator_forward.3} parent=0
    _
  %s9 = ssub.s32 1, %s7
  %s10 = scalar_select 0, %s9, %s7
  loop: start=0, step=1, limit=4
  $region2: #{pixel_discriminator_forward.3} parent=0 // loop_pre_header
    _
  $region3: #{pixel_discriminator_forward.3} parent=0 // loop_header
    %s12 = sphi 0, %s16
    %p13 = scmp.ge.s32.totalorder %s12, 4
    %s19 = sphi 0, %s31
    %s20 = sphi 0, %s27
    %s21 = sphi 0, %s19
    %s22 = sphi 0, %s20
    %s23 = sphi 0, %s21
    %s24 = sphi 0, %s22
    %s36 = sphi 0, %s38
    %s39 = sphi 0, %s36
    %s40 = sphi 0, %s39
    %s56 = sphi 0, %s40
    %s60 = sphi 0, %s60
    %s62 = sphi 0, %s60
    %s63 = sphi 0, %s62
    %s77 = sphi 0, %s63
    %s81 = sphi 0, %s81
    %s83 = sphi 0, %s81
    %s84 = sphi 0, %s83
    %s98 = sphi 0, %s84
    %s102 = sphi 0, %s102
    %s104 = sphi 0, %s102
    %s105 = sphi 0, %s104
    %s119 = sphi 0, %s105
    %s123 = sphi 0, %s123
    %s125 = sphi 0, %s123
    %s126 = sphi 0, %s125
    %s140 = sphi 0, %s126
    %s144 = sphi 0, %s144
    %s146 = sphi 0, %s144
    %s147 = sphi 0, %s146
    %s161 = sphi 0, %s147
    %s169 = sphi 0, %s171
    %s172 = sphi 0, %s169
    %s173 = sphi 0, %s172
    %s189 = sphi 0, %s173
  $region4: #{pixel_discriminator_forward.3} parent=0 // loop_header_branch
    %15 = sbr.rel (%p13) target = $region8
  $region5: #{pixel_discriminator_forward.3} parent=0 // loop_body
    %s17 = ssub.s32 %s12, 1
    %s18 = ssub.s32 %s12, 2
    %s25 = sadd.s32 1, %s20
    %p26 = scmp.ge.s32.totalorder %s25, 1
    %s27 = scalar_select %p26, 0, %s25
    %s28 = sadd.s32 1, %s19
    %s29 = scalar_select %p26, %s28, %s19
    %p30 = scmp.ge.s32.totalorder %s29, 2
    %s31 = scalar_select %p30, 0, %s29
    %s32 = ssub.s32 %s19, %s31
    %s33 = ssub.s32 %s20, %s27
    %s34 = sor.u32 %s32, %s33
    %p35 = scmp.eq.s32.totalorder %s34, 0
    %s37 = sadd.s32 %s36, 1
    %s38 = scalar_select %p35, %s36, %s37
    %p41 = pneg %p35
    %p42 = scmp.eq.s32.totalorder %s12, 1
    %p43 = por %p41, %p42
    %p44 = scmp.ne.s32.totalorder %s36, %s39
    %p45 = scmp.eq.s32.totalorder %s12, 0
    %p46 = por %p44, %p45
    %p47 = scmp.ne.s32.totalorder %s36, %s39
    %p48 = scmp.eq.s32.totalorder %s17, 1
    %p49 = por %p47, %p48
    %p50 = scmp.ne.s32.totalorder %s39, %s40
    %p51 = scmp.eq.s32.totalorder %s17, 0
    %p52 = por %p50, %p51
    %p53 = scmp.ne.s32.totalorder %s39, %s40
    %p54 = scmp.eq.s32.totalorder %s18, 1
    %p55 = por %p53, %p54
    %p57 = scmp.ne.s32.totalorder %s40, %s56
    %p58 = scmp.eq.s32.totalorder %s18, 0
    %p59 = por %p57, %p58
    %s61 = sadd.s32 %s60, 1
    %p64 = scmp.eq.s32.totalorder %s12, 1
    %p65 = scmp.ne.s32.totalorder %s60, %s62
    %p66 = scmp.eq.s32.totalorder %s12, 0
    %p67 = por %p65, %p66
    %p68 = scmp.ne.s32.totalorder %s60, %s62
    %p69 = scmp.eq.s32.totalorder %s17, 1
    %p70 = por %p68, %p69
    %p71 = scmp.ne.s32.totalorder %s62, %s63
    %p72 = scmp.eq.s32.totalorder %s17, 0
    %p73 = por %p71, %p72
    %p74 = scmp.ne.s32.totalorder %s62, %s63
    %p75 = scmp.eq.s32.totalorder %s18, 1
    %p76 = por %p74, %p75
    %p78 = scmp.ne.s32.totalorder %s63, %s77
    %p79 = scmp.eq.s32.totalorder %s18, 0
    %p80 = por %p78, %p79
    %s82 = sadd.s32 %s81, 1
    %p85 = scmp.eq.s32.totalorder %s12, 1
    %p86 = scmp.ne.s32.totalorder %s81, %s83
    %p87 = scmp.eq.s32.totalorder %s12, 0
    %p88 = por %p86, %p87
    %p89 = scmp.ne.s32.totalorder %s81, %s83
    %p90 = scmp.eq.s32.totalorder %s17, 1
    %p91 = por %p89, %p90
    %p92 = scmp.ne.s32.totalorder %s83, %s84
    %p93 = scmp.eq.s32.totalorder %s17, 0
    %p94 = por %p92, %p93
    %p95 = scmp.ne.s32.totalorder %s83, %s84
    %p96 = scmp.eq.s32.totalorder %s18, 1
    %p97 = por %p95, %p96
    %p99 = scmp.ne.s32.totalorder %s84, %s98
    %p100 = scmp.eq.s32.totalorder %s18, 0
    %p101 = por %p99, %p100
    %s103 = sadd.s32 %s102, 1
    %p106 = scmp.eq.s32.totalorder %s12, 1
    %p107 = scmp.ne.s32.totalorder %s102, %s104
    %p108 = scmp.eq.s32.totalorder %s12, 0
    %p109 = por %p107, %p108
    %p110 = scmp.ne.s32.totalorder %s102, %s104
    %p111 = scmp.eq.s32.totalorder %s17, 1
    %p112 = por %p110, %p111
    %p113 = scmp.ne.s32.totalorder %s104, %s105
    %p114 = scmp.eq.s32.totalorder %s17, 0
    %p115 = por %p113, %p114
    %p116 = scmp.ne.s32.totalorder %s104, %s105
    %p117 = scmp.eq.s32.totalorder %s18, 1
    %p118 = por %p116, %p117
    %p120 = scmp.ne.s32.totalorder %s105, %s119
    %p121 = scmp.eq.s32.totalorder %s18, 0
    %p122 = por %p120, %p121
    %s124 = sadd.s32 %s123, 1
    %p127 = scmp.eq.s32.totalorder %s12, 1
    %p128 = scmp.ne.s32.totalorder %s123, %s125
    %p129 = scmp.eq.s32.totalorder %s12, 0
    %p130 = por %p128, %p129
    %p131 = scmp.ne.s32.totalorder %s123, %s125
    %p132 = scmp.eq.s32.totalorder %s17, 1
    %p133 = por %p131, %p132
    %p134 = scmp.ne.s32.totalorder %s125, %s126
    %p135 = scmp.eq.s32.totalorder %s17, 0
    %p136 = por %p134, %p135
    %p137 = scmp.ne.s32.totalorder %s125, %s126
    %p138 = scmp.eq.s32.totalorder %s18, 1
    %p139 = por %p137, %p138
    %p141 = scmp.ne.s32.totalorder %s126, %s140
    %p142 = scmp.eq.s32.totalorder %s18, 0
    %p143 = por %p141, %p142
    %s145 = sadd.s32 %s144, 1
    %p148 = scmp.eq.s32.totalorder %s12, 1
    %p149 = scmp.ne.s32.totalorder %s144, %s146
    %p150 = scmp.eq.s32.totalorder %s12, 0
    %p151 = por %p149, %p150
    %p152 = scmp.ne.s32.totalorder %s144, %s146
    %p153 = scmp.eq.s32.totalorder %s17, 1
    %p154 = por %p152, %p153
    %p155 = scmp.ne.s32.totalorder %s146, %s147
    %p156 = scmp.eq.s32.totalorder %s17, 0
    %p157 = por %p155, %p156
    %p158 = scmp.ne.s32.totalorder %s146, %s147
    %p159 = scmp.eq.s32.totalorder %s18, 1
    %p160 = por %p158, %p159
    %p162 = scmp.ne.s32.totalorder %s147, %s161
    %p163 = scmp.eq.s32.totalorder %s18, 0
    %p164 = por %p162, %p163
    %s165 = ssub.s32 %s19, %s31
    %s166 = ssub.s32 %s20, %s27
    %s167 = sor.u32 %s165, %s166
    %p168 = scmp.eq.s32.totalorder %s167, 0
    %s170 = sadd.s32 %s169, 1
    %s171 = scalar_select %p168, %s169, %s170
    %p174 = pneg %p168
    %p175 = scmp.eq.s32.totalorder %s12, 1
    %p176 = por %p174, %p175
    %p177 = scmp.ne.s32.totalorder %s169, %s172
    %p178 = scmp.eq.s32.totalorder %s12, 0
    %p179 = por %p177, %p178
    %p180 = scmp.ne.s32.totalorder %s169, %s172
    %p181 = scmp.eq.s32.totalorder %s17, 1
    %p182 = por %p180, %p181
    %p183 = scmp.ne.s32.totalorder %s172, %s173
    %p184 = scmp.eq.s32.totalorder %s17, 0
    %p185 = por %p183, %p184
    %p186 = scmp.ne.s32.totalorder %s172, %s173
    %p187 = scmp.eq.s32.totalorder %s18, 1
    %p188 = por %p186, %p187
    %p190 = scmp.ne.s32.totalorder %s173, %s189
    %p191 = scmp.eq.s32.totalorder %s18, 0
    %p192 = por %p190, %p191
    %p193 = scmp.le.s32.totalorder 1, %s12
    %p194 = scmp.lt.s32.totalorder %s12, 3
    %p195 = pnand %p193, %p194
    %p196 = pneg %p195
    // Predicated region
    $region9: #{pixel_discriminator_forward.3} parent=5 // pred_check
      _
    $region10: #{pixel_discriminator_forward.3} parent=5 // pred_check_branch
      %198 = sbr.rel (%p195) target = $region12
    $region11: #{pixel_discriminator_forward.3} parent=5 // pred_region
      %s199 = ssub.s32 %s12, 1
      // Predicated region
      $region13: #{pixel_discriminator_forward.3} parent=11 // pred_check
        %p200 = pneg %p73
      $region14: #{pixel_discriminator_forward.3} parent=11 // pred_check_branch
        %202 = sbr.rel (%p200) target = $region16
      $region15: #{pixel_discriminator_forward.3} parent=11 // pred_region
        _
      $region16: #{pixel_discriminator_forward.3} parent=11 // pred_fallthru
        _
      // Predicated region
      $region17: #{pixel_discriminator_forward.3} parent=11 // pred_check
        %p203 = pneg %p94
      $region18: #{pixel_discriminator_forward.3} parent=11 // pred_check_branch
        %205 = sbr.rel (%p203) target = $region20
      $region19: #{pixel_discriminator_forward.3} parent=11 // pred_region
        _
      $region20: #{pixel_discriminator_forward.3} parent=11 // pred_fallthru
        _
      // Predicated region
      $region21: #{pixel_discriminator_forward.3} parent=11 // pred_check
        %p206 = pneg %p115
      $region22: #{pixel_discriminator_forward.3} parent=11 // pred_check_branch
        %208 = sbr.rel (%p206) target = $region24
      $region23: #{pixel_discriminator_forward.3} parent=11 // pred_region
        _
      $region24: #{pixel_discriminator_forward.3} parent=11 // pred_fallthru
        _
      // Predicated region
      $region25: #{pixel_discriminator_forward.3} parent=11 // pred_check
        %p209 = pneg %p136
      $region26: #{pixel_discriminator_forward.3} parent=11 // pred_check_branch
        %211 = sbr.rel (%p209) target = $region28
      $region27: #{pixel_discriminator_forward.3} parent=11 // pred_region
        _
      $region28: #{pixel_discriminator_forward.3} parent=11 // pred_fallthru
        _
      // Predicated region
      $region29: #{pixel_discriminator_forward.3} parent=11 // pred_check
        %p212 = pneg %p157
      $region30: #{pixel_discriminator_forward.3} parent=11 // pred_check_branch
        %214 = sbr.rel (%p212) target = $region32
      $region31: #{pixel_discriminator_forward.3} parent=11 // pred_region
        _
      $region32: #{pixel_discriminator_forward.3} parent=11 // pred_fallthru
        _
    $region12: #{pixel_discriminator_forward.3} parent=5 // pred_fallthru
      _
    %p215 = scmp.lt.s32.totalorder %s12, 2
    // Predicated region
    $region33: #{pixel_discriminator_forward.3} parent=5 // pred_check
      %p216 = pneg %p215
    $region34: #{pixel_discriminator_forward.3} parent=5 // pred_check_branch
      %218 = sbr.rel (%p216) target = $region36
    $region35: #{pixel_discriminator_forward.3} parent=5 // pred_region
      // Predicated region
      $region37: #{pixel_discriminator_forward.3} parent=35 // pred_check
        %p219 = pneg %p46
      $region38: #{pixel_discriminator_forward.3} parent=35 // pred_check_branch
        %221 = sbr.rel (%p219) target = $region40
      $region39: #{pixel_discriminator_forward.3} parent=35 // pred_region
        %s222 = smul.u32 2, %s20
        %p223 = scmp.lt.s32.totalorder %s19, 1
        %s224 = scalar_select %p223, %s19, 1
        %p225 = scmp.lt.s32.totalorder %s222, 1
        %s226 = scalar_select %p225, %s222, 1
        %s227 = smul.addr %s224, 2
        %s228 = sadd.s32 %s226, %s227
        %s229 = smul.addr %s228, 4
        %s230 = scalar_lea.vmem %s0, %s229
        %s231 = smul.u32 2, %s20
      $region40: #{pixel_discriminator_forward.3} parent=35 // pred_fallthru
        _
    $region36: #{pixel_discriminator_forward.3} parent=5 // pred_fallthru
      _
    %p232 = scmp.le.s32.totalorder 1, %s12
    %p233 = scmp.lt.s32.totalorder %s12, 3
    %p234 = pnand %p232, %p233
    %p235 = pneg %p234
    // Predicated region
    $region41: #{pixel_discriminator_forward.3} parent=5 // pred_check
      _
    $region42: #{pixel_discriminator_forward.3} parent=5 // pred_check_branch
      %237 = sbr.rel (%p234) target = $region44
    $region43: #{pixel_discriminator_forward.3} parent=5 // pred_region
      %s238 = ssub.s32 %s12, 1
      %s239 = smul.u32 2, %s22
      %p240 = scmp.lt.s32.totalorder %s21, 1
      %s241 = scalar_select %p240, %s21, 1
      %p242 = scmp.lt.s32.totalorder %s239, 1
      %s243 = scalar_select %p242, %s239, 1
      %s244 = smul.addr %s241, 2
      %s245 = sadd.s32 %s243, %s244
      %s246 = smul.addr %s245, 4
      %s247 = scalar_lea.vmem %s0, %s246
      %p248 = pneg %p52
      %p249 = pneg %p49
      %p250 = pneg %p73
      %p251 = pneg %p70
      %p252 = pneg %p94
      %p253 = pneg %p91
      %p254 = pneg %p115
      %p255 = pneg %p112
      %p256 = pneg %p136
      %p257 = pneg %p133
      %p258 = pneg %p157
      %p259 = pneg %p154
      %p260 = pneg %p185
      %p261 = pneg %p182
      %s262 = smul.u32 2, %s22
      %p263 = scmp.lt.s32.totalorder %s21, 1
      %s264 = scalar_select %p263, %s21, 1
      %p265 = scmp.lt.s32.totalorder %s262, 1
      %s266 = scalar_select %p265, %s262, 1
      %s267 = smul.addr %s264, 2
      %s268 = sadd.s32 %s266, %s267
      %s269 = scalar_lea.vmem %s6, %s268
      %s270 = smul.u32 2, %s22
      %p271 = scmp.lt.s32.totalorder %s21, 1
      %s272 = scalar_select %p271, %s21, 1
      %p273 = scmp.lt.s32.totalorder %s270, 1
      %s274 = scalar_select %p273, %s270, 1
      %s275 = smul.addr %s272, 2
      %s276 = sadd.s32 %s274, %s275
      %s277 = smul.addr %s276, 4
      %s278 = scalar_lea.vmem %s0, %s277
      %s279 = smul.u32 2, %s22
      %s280 = smul.u32 2, %s22
      %p281 = scmp.lt.s32.totalorder %s21, 1
      %s282 = scalar_select %p281, %s21, 1
      %p283 = scmp.lt.s32.totalorder %s280, 1
      %s284 = scalar_select %p283, %s280, 1
      %s285 = smul.addr %s282, 2
      %s286 = sadd.s32 %s284, %s285
      %s287 = scalar_lea.vmem %s6, %s286
      %s288 = smul.u32 2, %s22
      %v290 = vld [vmem:[%s278] sm:$0xff]
      %292 = vst [vmem:[#allocation1] ss:$2 sm:$0xff] %v290
      %v293 = vld.sshfl [vmem:[#allocation1] sm:$0xff pattern:$0x75316420]
      %v294 = vld.sshfl [vmem:[#allocation1 + $0x8] sm:$0xff pattern:$0x75316420]
      %v297 = vpack.c.bf16 %v293, %v293
      %v298 = vpack.c.bf16 %v294, %v294
      %v299 = vld [vmem:[%s1] sm:$0xf]
      %v300 = vld [vmem:[%s1 + $0x4] sm:$0xf]
      %v301 = vld [vmem:[%s1 + $0x8] sm:$0xf]
      %v302 = vld [vmem:[%s1 + $0xc] sm:$0xf]
      %v303 = vld [vmem:[%s1 + $0x10] sm:$0xf]
      %v304 = vld [vmem:[%s1 + $0x14] sm:$0xf]
      %v305 = vld [vmem:[%s1 + $0x18] sm:$0xf]
      %v306 = vld [vmem:[%s1 + $0x1c] sm:$0xf]
      %v307 = vld [vmem:[%s2] sm:$0xff]
      %v308 = vld [vmem:[%s2 + $0x8] sm:$0xff]
      %v309 = vld [vmem:[%s2 + $0x10] sm:$0xff]
      %v310 = vld [vmem:[%s2 + $0x18] sm:$0xff]
      %v311 = vld [vmem:[%s2 + $0x20] sm:$0xff]
      %v312 = vld [vmem:[%s2 + $0x28] sm:$0xff]
      %v313 = vld [vmem:[%s2 + $0x30] sm:$0xff]
      %v314 = vld [vmem:[%s2 + $0x38] sm:$0xff]
      %316 = vset.pattern.permute.xlu0 0
      %317 = vperm.xlu0 %316, %v307
      %v318 = vpop.permute.xlu0 %317
      %321 = vset.pattern.permute.xlu0 0
      %322 = vperm.xlu0 %321, %v308
      %v323 = vpop.permute.xlu0 %322
      %326 = vset.pattern.permute.xlu0 0
      %327 = vperm.xlu0 %326, %v309
      %v328 = vpop.permute.xlu0 %327
      %331 = vset.pattern.permute.xlu0 0
      %332 = vperm.xlu0 %331, %v310
      %v333 = vpop.permute.xlu0 %332
      %336 = vset.pattern.permute.xlu0 0
      %337 = vperm.xlu0 %336, %v311
      %v338 = vpop.permute.xlu0 %337
      %341 = vset.pattern.permute.xlu0 0
      %342 = vperm.xlu0 %341, %v312
      %v343 = vpop.permute.xlu0 %342
      %346 = vset.pattern.permute.xlu0 0
      %347 = vperm.xlu0 %346, %v313
      %v348 = vpop.permute.xlu0 %347
      %351 = vset.pattern.permute.xlu0 0
      %352 = vperm.xlu0 %351, %v314
      %v353 = vpop.permute.xlu0 %352
      %v363 = vunpack.c.l.b16 %v299
      %v364 = vunpack.c.l.b16 %v300
      %v365 = vunpack.c.l.b16 %v301
      %v366 = vunpack.c.l.b16 %v302
      %v367 = vunpack.c.l.b16 %v303
      %v368 = vunpack.c.l.b16 %v304
      %v369 = vunpack.c.l.b16 %v305
      %v370 = vunpack.c.l.b16 %v306
      %v371 = vpack.c.b16 %v364, %v363
      %v372 = vpack.c.b16 %v366, %v365
      %v373 = vpack.c.b16 %v368, %v367
      %v374 = vpack.c.b16 %v370, %v369
      %vm375 = vcmask 31744
      %v377 = vsel %vm375, %v371, 0
      %v380 = vsel %vm375, %v372, 0
      %v383 = vsel %vm375, %v373, 0
      %v386 = vsel %vm375, %v374, 0
      %vm388 = vcmask 1041408
      %v390 = vsel %vm388, %v297, 0
      %v393 = vsel %vm388, %v298, 0
      %395 = vmatpush.bf16.msra.mxu0 0
      %396 = vmatpush.bf16.msra.mxu0 0
      %397 = vmatpush.bf16.msra.mxu0 0
      %398 = vmatpush.bf16.msra.mxu0 0
      %399 = vmatpush.bf16.msra.mxu0 0
      %400 = vmatpush.bf16.msra.mxu0 0
      %401 = vmatpush.bf16.msra.mxu0 0
      %402 = vmatpush.bf16.msra.mxu0 %v390
      %403 = vmatmul.bf16.gmra.mxu0 %v377
      %v404 = vpop.f32.mrf.mxu0
      %v405 = vadd.f32 %v318, %v404
      %v406 = vpop.f32.mrf.mxu0
      %v407 = vadd.f32 %v323, %v406
      %408 = vmatmul.bf16.gmra.mxu0 %v380
      %v409 = vpop.f32.mrf.mxu0
      %v410 = vadd.f32 %v328, %v409
      %v411 = vpop.f32.mrf.mxu0
      %v412 = vadd.f32 %v333, %v411
      %413 = vmatmul.bf16.gmra.mxu0 %v383
      %v414 = vpop.f32.mrf.mxu0
      %v415 = vadd.f32 %v338, %v414
      %v416 = vpop.f32.mrf.mxu0
      %v417 = vadd.f32 %v343, %v416
      %418 = vmatmul.bf16.gmra.mxu0 %v386
      %v419 = vpop.f32.mrf.mxu0
      %v420 = vadd.f32 %v348, %v419
      %v421 = vpop.f32.mrf.mxu0
      %v422 = vadd.f32 %v353, %v421
      %423 = vdwg.mxu0
      %424 = vmatpush.bf16.msra.mxu0 0
      %425 = vmatpush.bf16.msra.mxu0 0
      %426 = vmatpush.bf16.msra.mxu0 0
      %427 = vmatpush.bf16.msra.mxu0 0
      %428 = vmatpush.bf16.msra.mxu0 0
      %429 = vmatpush.bf16.msra.mxu0 0
      %430 = vmatpush.bf16.msra.mxu0 0
      %431 = vmatpush.bf16.msra.mxu0 %v393
      %432 = vmatmul.bf16.gmra.mxu0 %v377
      %v433 = vpop.f32.mrf.mxu0
      %v434 = vadd.f32 %v318, %v433
      %v435 = vpop.f32.mrf.mxu0
      %v436 = vadd.f32 %v323, %v435
      %437 = vmatmul.bf16.gmra.mxu0 %v380
      %v438 = vpop.f32.mrf.mxu0
      %v439 = vadd.f32 %v328, %v438
      %v440 = vpop.f32.mrf.mxu0
      %v441 = vadd.f32 %v333, %v440
      %442 = vmatmul.bf16.gmra.mxu0 %v383
      %v443 = vpop.f32.mrf.mxu0
      %v444 = vadd.f32 %v338, %v443
      %v445 = vpop.f32.mrf.mxu0
      %v446 = vadd.f32 %v343, %v445
      %447 = vmatmul.bf16.gmra.mxu0 %v386
      %v448 = vpop.f32.mrf.mxu0
      %v449 = vadd.f32 %v348, %v448
      %v450 = vpop.f32.mrf.mxu0
      %v451 = vadd.f32 %v353, %v450
      %452 = vdwg.mxu0
      %v453 = vmul.f32 %v405, 0.2
      %v454 = vmul.f32 %v434, 0.2
      %v455 = vmul.f32 %v407, 0.2
      %v456 = vmul.f32 %v436, 0.2
      %v457 = vmul.f32 %v410, 0.2
      %v458 = vmul.f32 %v439, 0.2
      %v459 = vmul.f32 %v412, 0.2
      %v460 = vmul.f32 %v441, 0.2
      %v461 = vmul.f32 %v415, 0.2
      %v462 = vmul.f32 %v444, 0.2
      %v463 = vmul.f32 %v417, 0.2
      %v464 = vmul.f32 %v446, 0.2
      %v465 = vmul.f32 %v420, 0.2
      %v466 = vmul.f32 %v449, 0.2
      %v467 = vmul.f32 %v422, 0.2
      %v468 = vmul.f32 %v451, 0.2
      %v469 = vmax.f32 %v405, %v453
      %v470 = vmax.f32 %v434, %v454
      %v471 = vmax.f32 %v407, %v455
      %v472 = vmax.f32 %v436, %v456
      %v473 = vmax.f32 %v410, %v457
      %v474 = vmax.f32 %v439, %v458
      %v475 = vmax.f32 %v412, %v459
      %v476 = vmax.f32 %v441, %v460
      %v477 = vmax.f32 %v415, %v461
      %v478 = vmax.f32 %v444, %v462
      %v479 = vmax.f32 %v417, %v463
      %v480 = vmax.f32 %v446, %v464
      %v481 = vmax.f32 %v420, %v465
      %v482 = vmax.f32 %v449, %v466
      %v483 = vmax.f32 %v422, %v467
      %v484 = vmax.f32 %v451, %v468
      %v485 = vpack.c.bf16 %v471, %v469
      %v486 = vpack.c.bf16 %v472, %v470
      %v487 = vpack.c.bf16 %v475, %v473
      %v488 = vpack.c.bf16 %v476, %v474
      %v489 = vpack.c.bf16 %v479, %v477
      %v490 = vpack.c.bf16 %v480, %v478
      %v491 = vpack.c.bf16 %v483, %v481
      %v492 = vpack.c.bf16 %v484, %v482
      %v493 = vld [vmem:[%s3] sm:$0xf]
      %v494 = vld [vmem:[%s3 + $0x4] sm:$0xf]
      %v495 = vld [vmem:[%s3 + $0x8] sm:$0xf]
      %v496 = vld [vmem:[%s3 + $0xc] sm:$0xf]
      %v497 = vld [vmem:[%s3 + $0x10] sm:$0xf]
      %v498 = vld [vmem:[%s3 + $0x14] sm:$0xf]
      %v499 = vld [vmem:[%s3 + $0x18] sm:$0xf]
      %v500 = vld [vmem:[%s3 + $0x1c] sm:$0xf]
      %v501 = vld [vmem:[%s3 + $0x20] sm:$0xf]
      %v502 = vld [vmem:[%s3 + $0x24] sm:$0xf]
      %v503 = vld [vmem:[%s3 + $0x28] sm:$0xf]
      %v504 = vld [vmem:[%s3 + $0x2c] sm:$0xf]
      %v505 = vld [vmem:[%s3 + $0x30] sm:$0xf]
      %v506 = vld [vmem:[%s3 + $0x34] sm:$0xf]
      %v507 = vld [vmem:[%s3 + $0x38] sm:$0xf]
      %v508 = vld [vmem:[%s3 + $0x3c] sm:$0xf]
      %v509 = vld [vmem:[%s4] sm:$0xff]
      %v510 = vld [vmem:[%s4 + $0x8] sm:$0xff]
      %v511 = vld [vmem:[%s4 + $0x10] sm:$0xff]
      %v512 = vld [vmem:[%s4 + $0x18] sm:$0xff]
      %v513 = vld [vmem:[%s4 + $0x20] sm:$0xff]
      %v514 = vld [vmem:[%s4 + $0x28] sm:$0xff]
      %v515 = vld [vmem:[%s4 + $0x30] sm:$0xff]
      %v516 = vld [vmem:[%s4 + $0x38] sm:$0xff]
      %v517 = vld [vmem:[%s4 + $0x40] sm:$0xff]
      %v518 = vld [vmem:[%s4 + $0x48] sm:$0xff]
      %v519 = vld [vmem:[%s4 + $0x50] sm:$0xff]
      %v520 = vld [vmem:[%s4 + $0x58] sm:$0xff]
      %v521 = vld [vmem:[%s4 + $0x60] sm:$0xff]
      %v522 = vld [vmem:[%s4 + $0x68] sm:$0xff]
      %v523 = vld [vmem:[%s4 + $0x70] sm:$0xff]
      %v524 = vld [vmem:[%s4 + $0x78] sm:$0xff]
      %526 = vset.pattern.permute.xlu0 0
      %527 = vperm.xlu0 %526, %v509
      %v528 = vpop.permute.xlu0 %527
      %531 = vset.pattern.permute.xlu0 0
      %532 = vperm.xlu0 %531, %v510
      %v533 = vpop.permute.xlu0 %532
      %536 = vset.pattern.permute.xlu0 0
      %537 = vperm.xlu0 %536, %v511
      %v538 = vpop.permute.xlu0 %537
      %541 = vset.pattern.permute.xlu0 0
      %542 = vperm.xlu0 %541, %v512
      %v543 = vpop.permute.xlu0 %542
      %546 = vset.pattern.permute.xlu0 0
      %547 = vperm.xlu0 %546, %v513
      %v548 = vpop.permute.xlu0 %547
      %551 = vset.pattern.permute.xlu0 0
      %552 = vperm.xlu0 %551, %v514
      %v553 = vpop.permute.xlu0 %552
      %556 = vset.pattern.permute.xlu0 0
      %557 = vperm.xlu0 %556, %v515
      %v558 = vpop.permute.xlu0 %557
      %561 = vset.pattern.permute.xlu0 0
      %562 = vperm.xlu0 %561, %v516
      %v563 = vpop.permute.xlu0 %562
      %566 = vset.pattern.permute.xlu0 0
      %567 = vperm.xlu0 %566, %v517
      %v568 = vpop.permute.xlu0 %567
      %571 = vset.pattern.permute.xlu0 0
      %572 = vperm.xlu0 %571, %v518
      %v573 = vpop.permute.xlu0 %572
      %576 = vset.pattern.permute.xlu0 0
      %577 = vperm.xlu0 %576, %v519
      %v578 = vpop.permute.xlu0 %577
      %581 = vset.pattern.permute.xlu0 0
      %582 = vperm.xlu0 %581, %v520
      %v583 = vpop.permute.xlu0 %582
      %586 = vset.pattern.permute.xlu0 0
      %587 = vperm.xlu0 %586, %v521
      %v588 = vpop.permute.xlu0 %587
      %591 = vset.pattern.permute.xlu0 0
      %592 = vperm.xlu0 %591, %v522
      %v593 = vpop.permute.xlu0 %592
      %596 = vset.pattern.permute.xlu0 0
      %597 = vperm.xlu0 %596, %v523
      %v598 = vpop.permute.xlu0 %597
      %601 = vset.pattern.permute.xlu0 0
      %602 = vperm.xlu0 %601, %v524
      %v603 = vpop.permute.xlu0 %602
      %v621 = vunpack.c.l.b16 %v493
      %v622 = vunpack.c.l.b16 %v494
      %v623 = vunpack.c.l.b16 %v495
      %v624 = vunpack.c.l.b16 %v496
      %v625 = vunpack.c.l.b16 %v497
      %v626 = vunpack.c.l.b16 %v498
      %v627 = vunpack.c.l.b16 %v499
      %v628 = vunpack.c.l.b16 %v500
      %v629 = vunpack.c.l.b16 %v501
      %v630 = vunpack.c.l.b16 %v502
      %v631 = vunpack.c.l.b16 %v503
      %v632 = vunpack.c.l.b16 %v504
      %v633 = vunpack.c.l.b16 %v505
      %v634 = vunpack.c.l.b16 %v506
      %v635 = vunpack.c.l.b16 %v507
      %v636 = vunpack.c.l.b16 %v508
      %v637 = vpack.c.b16 %v622, %v621
      %v638 = vpack.c.b16 %v624, %v623
      %v639 = vpack.c.b16 %v626, %v625
      %v640 = vpack.c.b16 %v628, %v627
      %v641 = vpack.c.b16 %v630, %v629
      %v642 = vpack.c.b16 %v632, %v631
      %v643 = vpack.c.b16 %v634, %v633
      %v644 = vpack.c.b16 %v636, %v635
      %vm645 = vcmask 523264
      %v647 = vsel %vm645, %v637, 0
      %v650 = vsel %vm645, %v638, 0
      %v653 = vsel %vm645, %v639, 0
      %v656 = vsel %vm645, %v640, 0
      %v659 = vsel %vm645, %v641, 0
      %v662 = vsel %vm645, %v642, 0
      %v665 = vsel %vm645, %v643, 0
      %v668 = vsel %vm645, %v644, 0
      %670 = vmatpush.bf16.msra.mxu0 0
      %671 = vmatpush.bf16.msra.mxu0 0
      %672 = vmatpush.bf16.msra.mxu0 0
      %673 = vmatpush.bf16.msra.mxu0 0
      %674 = vmatpush.bf16.msra.mxu0 %v491
      %675 = vmatpush.bf16.msra.mxu0 %v489
      %676 = vmatpush.bf16.msra.mxu0 %v487
      %677 = vmatpush.bf16.msra.mxu0 %v485
      %678 = vmatmul.bf16.gmra.mxu0 %v647
      %v679 = vpop.f32.mrf.mxu0
      %v680 = vadd.f32 %v528, %v679
      %v681 = vpop.f32.mrf.mxu0
      %v682 = vadd.f32 %v533, %v681
      %683 = vmatmul.bf16.gmra.mxu0 %v650
      %v684 = vpop.f32.mrf.mxu0
      %v685 = vadd.f32 %v538, %v684
      %v686 = vpop.f32.mrf.mxu0
      %v687 = vadd.f32 %v543, %v686
      %688 = vmatmul.bf16.gmra.mxu0 %v653
      %v689 = vpop.f32.mrf.mxu0
      %v690 = vadd.f32 %v548, %v689
      %v691 = vpop.f32.mrf.mxu0
      %v692 = vadd.f32 %v553, %v691
      %693 = vmatmul.bf16.gmra.mxu0 %v656
      %v694 = vpop.f32.mrf.mxu0
      %v695 = vadd.f32 %v558, %v694
      %v696 = vpop.f32.mrf.mxu0
      %v697 = vadd.f32 %v563, %v696
      %698 = vmatmul.bf16.gmra.mxu0 %v659
      %v699 = vpop.f32.mrf.mxu0
      %v700 = vadd.f32 %v568, %v699
      %v701 = vpop.f32.mrf.mxu0
      %v702 = vadd.f32 %v573, %v701
      %703 = vmatmul.bf16.gmra.mxu0 %v662
      %v704 = vpop.f32.mrf.mxu0
      %v705 = vadd.f32 %v578, %v704
      %v706 = vpop.f32.mrf.mxu0
      %v707 = vadd.f32 %v583, %v706
      %708 = vmatmul.bf16.gmra.mxu0 %v665
      %v709 = vpop.f32.mrf.mxu0
      %v710 = vadd.f32 %v588, %v709
      %v711 = vpop.f32.mrf.mxu0
      %v712 = vadd.f32 %v593, %v711
      %713 = vmatmul.bf16.gmra.mxu0 %v668
      %v714 = vpop.f32.mrf.mxu0
      %v715 = vadd.f32 %v598, %v714
      %v716 = vpop.f32.mrf.mxu0
      %v717 = vadd.f32 %v603, %v716
      %718 = vdwg.mxu0
      %719 = vmatpush.bf16.msra.mxu0 0
      %720 = vmatpush.bf16.msra.mxu0 0
      %721 = vmatpush.bf16.msra.mxu0 0
      %722 = vmatpush.bf16.msra.mxu0 0
      %723 = vmatpush.bf16.msra.mxu0 %v492
      %724 = vmatpush.bf16.msra.mxu0 %v490
      %725 = vmatpush.bf16.msra.mxu0 %v488
      %726 = vmatpush.bf16.msra.mxu0 %v486
      %727 = vmatmul.bf16.gmra.mxu0 %v647
      %v728 = vpop.f32.mrf.mxu0
      %v729 = vadd.f32 %v528, %v728
      %v730 = vpop.f32.mrf.mxu0
      %v731 = vadd.f32 %v533, %v730
      %732 = vmatmul.bf16.gmra.mxu0 %v650
      %v733 = vpop.f32.mrf.mxu0
      %v734 = vadd.f32 %v538, %v733
      %v735 = vpop.f32.mrf.mxu0
      %v736 = vadd.f32 %v543, %v735
      %737 = vmatmul.bf16.gmra.mxu0 %v653
      %v738 = vpop.f32.mrf.mxu0
      %v739 = vadd.f32 %v548, %v738
      %v740 = vpop.f32.mrf.mxu0
      %v741 = vadd.f32 %v553, %v740
      %742 = vmatmul.bf16.gmra.mxu0 %v656
      %v743 = vpop.f32.mrf.mxu0
      %v744 = vadd.f32 %v558, %v743
      %v745 = vpop.f32.mrf.mxu0
      %v746 = vadd.f32 %v563, %v745
      %747 = vmatmul.bf16.gmra.mxu0 %v659
      %v748 = vpop.f32.mrf.mxu0
      %v749 = vadd.f32 %v568, %v748
      %v750 = vpop.f32.mrf.mxu0
      %v751 = vadd.f32 %v573, %v750
      %752 = vmatmul.bf16.gmra.mxu0 %v662
      %v753 = vpop.f32.mrf.mxu0
      %v754 = vadd.f32 %v578, %v753
      %v755 = vpop.f32.mrf.mxu0
      %v756 = vadd.f32 %v583, %v755
      %757 = vmatmul.bf16.gmra.mxu0 %v665
      %v758 = vpop.f32.mrf.mxu0
      %v759 = vadd.f32 %v588, %v758
      %v760 = vpop.f32.mrf.mxu0
      %v761 = vadd.f32 %v593, %v760
      %762 = vmatmul.bf16.gmra.mxu0 %v668
      %v763 = vpop.f32.mrf.mxu0
      %v764 = vadd.f32 %v598, %v763
      %v765 = vpop.f32.mrf.mxu0
      %v766 = vadd.f32 %v603, %v765
      %767 = vdwg.mxu0
      %v768 = vmul.f32 %v680, 0.2
      %v769 = vmul.f32 %v729, 0.2
      %v770 = vmul.f32 %v682, 0.2
      %v771 = vmul.f32 %v731, 0.2
      %v772 = vmul.f32 %v685, 0.2
      %v773 = vmul.f32 %v734, 0.2
      %v774 = vmul.f32 %v687, 0.2
      %v775 = vmul.f32 %v736, 0.2
      %v776 = vmul.f32 %v690, 0.2
      %v777 = vmul.f32 %v739, 0.2
      %v778 = vmul.f32 %v692, 0.2
      %v779 = vmul.f32 %v741, 0.2
      %v780 = vmul.f32 %v695, 0.2
      %v781 = vmul.f32 %v744, 0.2
      %v782 = vmul.f32 %v697, 0.2
      %v783 = vmul.f32 %v746, 0.2
      %v784 = vmul.f32 %v700, 0.2
      %v785 = vmul.f32 %v749, 0.2
      %v786 = vmul.f32 %v702, 0.2
      %v787 = vmul.f32 %v751, 0.2
      %v788 = vmul.f32 %v705, 0.2
      %v789 = vmul.f32 %v754, 0.2
      %v790 = vmul.f32 %v707, 0.2
      %v791 = vmul.f32 %v756, 0.2
      %v792 = vmul.f32 %v710, 0.2
      %v793 = vmul.f32 %v759, 0.2
      %v794 = vmul.f32 %v712, 0.2
      %v795 = vmul.f32 %v761, 0.2
      %v796 = vmul.f32 %v715, 0.2
      %v797 = vmul.f32 %v764, 0.2
      %v798 = vmul.f32 %v717, 0.2
      %v799 = vmul.f32 %v766, 0.2
      %v800 = vmax.f32 %v680, %v768
      %v801 = vmax.f32 %v729, %v769
      %v802 = vmax.f32 %v682, %v770
      %v803 = vmax.f32 %v731, %v771
      %v804 = vmax.f32 %v685, %v772
      %v805 = vmax.f32 %v734, %v773
      %v806 = vmax.f32 %v687, %v774
      %v807 = vmax.f32 %v736, %v775
      %v808 = vmax.f32 %v690, %v776
      %v809 = vmax.f32 %v739, %v777
      %v810 = vmax.f32 %v692, %v778
      %v811 = vmax.f32 %v741, %v779
      %v812 = vmax.f32 %v695, %v780
      %v813 = vmax.f32 %v744, %v781
      %v814 = vmax.f32 %v697, %v782
      %v815 = vmax.f32 %v746, %v783
      %v816 = vmax.f32 %v700, %v784
      %v817 = vmax.f32 %v749, %v785
      %v818 = vmax.f32 %v702, %v786
      %v819 = vmax.f32 %v751, %v787
      %v820 = vmax.f32 %v705, %v788
      %v821 = vmax.f32 %v754, %v789
      %v822 = vmax.f32 %v707, %v790
      %v823 = vmax.f32 %v756, %v791
      %v824 = vmax.f32 %v710, %v792
      %v825 = vmax.f32 %v759, %v793
      %v826 = vmax.f32 %v712, %v794
      %v827 = vmax.f32 %v761, %v795
      %v828 = vmax.f32 %v715, %v796
      %v829 = vmax.f32 %v764, %v797
      %v830 = vmax.f32 %v717, %v798
      %v831 = vmax.f32 %v766, %v799
      %v832 = vpack.c.bf16 %v802, %v800
      %v833 = vpack.c.bf16 %v803, %v801
      %v834 = vpack.c.bf16 %v806, %v804
      %v835 = vpack.c.bf16 %v807, %v805
      %v836 = vpack.c.bf16 %v810, %v808
      %v837 = vpack.c.bf16 %v811, %v809
      %v838 = vpack.c.bf16 %v814, %v812
      %v839 = vpack.c.bf16 %v815, %v813
      %v840 = vpack.c.bf16 %v818, %v816
      %v841 = vpack.c.bf16 %v819, %v817
      %v842 = vpack.c.bf16 %v822, %v820
      %v843 = vpack.c.bf16 %v823, %v821
      %v844 = vpack.c.bf16 %v826, %v824
      %v845 = vpack.c.bf16 %v827, %v825
      %v846 = vpack.c.bf16 %v830, %v828
      %v847 = vpack.c.bf16 %v831, %v829
      %v848 = vld [vmem:[%s5] sm:$0x1]
      %849 = vmatpush.bf16.msra.mxu0 %v846
      %850 = vmatpush.bf16.msra.mxu0 %v844
      %851 = vmatpush.bf16.msra.mxu0 %v842
      %852 = vmatpush.bf16.msra.mxu0 %v840
      %853 = vmatpush.bf16.msra.mxu0 %v838
      %854 = vmatpush.bf16.msra.mxu0 %v836
      %855 = vmatpush.bf16.msra.mxu0 %v834
      %856 = vmatpush.bf16.msra.mxu0 %v832
      %857 = vmatmul.bf16.gmra.mxu0 %v848
      %v858 = vpop.f32.mrf.mxu0
      %v859 = vadd.f32 0.0, %v858
      %v860 = vpop.f32.mrf.mxu0
      %861 = vdwg.mxu0
      %862 = vmatpush.bf16.msra.mxu0 %v847
      %863 = vmatpush.bf16.msra.mxu0 %v845
      %864 = vmatpush.bf16.msra.mxu0 %v843
      %865 = vmatpush.bf16.msra.mxu0 %v841
      %866 = vmatpush.bf16.msra.mxu0 %v839
      %867 = vmatpush.bf16.msra.mxu0 %v837
      %868 = vmatpush.bf16.msra.mxu0 %v835
      %869 = vmatpush.bf16.msra.mxu0 %v833
      %870 = vmatmul.bf16.gmra.mxu0 %v848
      %v871 = vpop.f32.mrf.mxu0
      %v872 = vadd.f32 0.0, %v871
      %v873 = vpop.f32.mrf.mxu0
      %874 = vdwg.mxu0
      %v875 = vpack.c.bf16 %v872, %v859
      %v877 = vrot.slane %v875, 3
      %vm878 = vcmask 1040384
      %v881 = vsel %vm878, %v875, %v877
      %vm883 = vcmask 1040384
      %vm884 = vsmask.f32 256
      %vm885 = vmand %vm883, %vm884
      %vm886 = vcmask 1041409
      %vm887 = vsmask.f32 1280
      %vm888 = vmand %vm886, %vm887
      %vm889 = vmor %vm888, %vm885
      %v890 = vld [vmem:[%s287] sm:$0x3]
      %v891 = vsel %vm889, %v881, %v890
      %892 = vst [vmem:[%s287] sm:$0x3] %v891
      %s893 = smul.u32 2, %s22
      %p894 = scmp.lt.s32.totalorder %s21, 1
      %s895 = scalar_select %p894, %s21, 1
      %p896 = scmp.lt.s32.totalorder %s893, 1
      %s897 = scalar_select %p896, %s893, 1
      %s898 = smul.addr %s895, 2
      %s899 = sadd.s32 %s897, %s898
      %s900 = scalar_lea.vmem %s6, %s899
      // Predicated region
      $region45: #{pixel_discriminator_forward.3} parent=43 // pred_check
        %p901 = pneg %p182
      $region46: #{pixel_discriminator_forward.3} parent=43 // pred_check_branch
        %903 = sbr.rel (%p901) target = $region48
      $region47: #{pixel_discriminator_forward.3} parent=43 // pred_region
        %s904 = smul.u32 2, %s22
      $region48: #{pixel_discriminator_forward.3} parent=43 // pred_fallthru
        _
    $region44: #{pixel_discriminator_forward.3} parent=5 // pred_fallthru
      _
    %p905 = scmp.le.s32.totalorder 2, %s12
    // Predicated region
    $region49: #{pixel_discriminator_forward.3} parent=5 // pred_check
      %p906 = pneg %p905
    $region50: #{pixel_discriminator_forward.3} parent=5 // pred_check_branch
      %908 = sbr.rel (%p906) target = $region52
    $region51: #{pixel_discriminator_forward.3} parent=5 // pred_region
      %s909 = ssub.s32 %s12, 2
      // Predicated region
      $region53: #{pixel_discriminator_forward.3} parent=51 // pred_check
        %p910 = pneg %p188
      $region54: #{pixel_discriminator_forward.3} parent=51 // pred_check_branch
        %912 = sbr.rel (%p910) target = $region56
      $region55: #{pixel_discriminator_forward.3} parent=51 // pred_region
        %s913 = smul.u32 2, %s24
        %p914 = scmp.lt.s32.totalorder %s23, 1
        %s915 = scalar_select %p914, %s23, 1
        %p916 = scmp.lt.s32.totalorder %s913, 1
        %s917 = scalar_select %p916, %s913, 1
        %s918 = smul.addr %s915, 2
        %s919 = sadd.s32 %s917, %s918
        %s920 = scalar_lea.vmem %s6, %s919
      $region56: #{pixel_discriminator_forward.3} parent=51 // pred_fallthru
        _
    $region52: #{pixel_discriminator_forward.3} parent=5 // pred_fallthru
      _
  $region6: #{pixel_discriminator_forward.3} parent=0 // loop_footer
    %s16 = sadd.s32 1, %s12
  $region7: #{pixel_discriminator_forward.3} parent=0 // loop_footer_branch
    %11 = sbr.rel target = $region3
  $region8: #{pixel_discriminator_forward.3} parent=0 // loop_exit
    _

</llo_original>
